<compile_context>
chip_gen: v5e
topology: v5e:2x2
jax: 0.10.0
libtpu: 0.0.40
codegen_flags: <defaults>
</compile_context>

<pallas_src>
import functools

import jax
import jax.numpy as jnp
import numpy as np
from jax.experimental import pallas as pl
from jax.experimental.pallas import tpu as pltpu


def _round_up(v, m):
    return ((v + m - 1) // m) * m


def _block_diag(a, b):
    ra, ca = a.shape
    rb, cb = b.shape
    top = jnp.concatenate([a, jnp.zeros((ra, cb), a.dtype)], axis=1)
    bot = jnp.concatenate([jnp.zeros((rb, ca), b.dtype), b], axis=1)
    return jnp.concatenate([top, bot], axis=0)


# ---------------------------------------------------------------------------
# Single-pass kernel: whole (2C, N) slab resident in VMEM, one grid step per
# batch element.  One HBM read + one HBM write of the activation.
# ---------------------------------------------------------------------------
def _single_pass_kernel(xm_ref, xp_ref, w1_ref, b1_ref, f1_ref, f2_ref,
                        w2_ref, b2_ref, o_ref, *, nc, n_valid):
    x = jnp.concatenate([xm_ref[0], xp_ref[0]], axis=0)             # (2C, N)
    y = jnp.dot(w1_ref[...], x, preferred_element_type=jnp.float32) + b1_ref[...]
    y = jnp.maximum(y, 0.1 * y)                                     # LeakyReLU(0.1)
    pooled = jnp.sum(y, axis=1, keepdims=True) * (1.0 / n_valid)    # (2C, 1)
    h = jnp.maximum(
        jnp.dot(f1_ref[...], pooled, preferred_element_type=jnp.float32), 0.0)
    s = jax.nn.sigmoid(
        jnp.dot(f2_ref[...], h, preferred_element_type=jnp.float32))
    y = y * s                                                       # SE scaling
    z = jnp.dot(w2_ref[...], y, preferred_element_type=jnp.float32) + b2_ref[...]
    out = x + z                                                     # residual
    mag = out[:nc]
    pha = out[nc:]
    o_ref[0] = jnp.concatenate([mag * jnp.cos(pha), mag * jnp.sin(pha)], axis=0)


# ---------------------------------------------------------------------------
# Two-pass fallback (large images).
# ---------------------------------------------------------------------------
def _se_scale_kernel(xm_ref, xp_ref, w1_ref, b1_ref, f1_ref, f2_ref,
                     s_ref, acc_ref, *, n_valid, n_pad):
    """Phase 1: accumulate SE average pool over N-tiles, emit the SE scale."""
    n = pl.program_id(1)

    @pl.when(n == 0)
    def _():
        acc_ref[...] = jnp.zeros_like(acc_ref)

    x = jnp.concatenate([xm_ref[0], xp_ref[0]], axis=0)             # (2C, TN)
    y = jnp.dot(w1_ref[...], x, preferred_element_type=jnp.float32) + b1_ref[...]
    y = jnp.maximum(y, 0.1 * y)
    acc_ref[...] += jnp.sum(y, axis=1, keepdims=True)               # (2C, 1)

    @pl.when(n == pl.num_programs(1) - 1)
    def _():
        acc = acc_ref[...]
        if n_pad:  # static: padded (zero) lanes contribute leaky_relu(b1) each
            b1 = b1_ref[...]
            acc = acc - float(n_pad) * jnp.maximum(b1, 0.1 * b1)
        pooled = acc * (1.0 / n_valid)
        h = jnp.maximum(
            jnp.dot(f1_ref[...], pooled, preferred_element_type=jnp.float32), 0.0)
        s_ref[0] = jax.nn.sigmoid(
            jnp.dot(f2_ref[...], h, preferred_element_type=jnp.float32))


def _apply_kernel(xm_ref, xp_ref, s_ref, w1_ref, b1_ref, w2_ref, b2_ref,
                  o_ref, *, nc):
    """Phase 2: conv1+LeakyReLU (recomputed), SE scale, conv2, residual,
    mag/pha -> real/imag, single fused lane-dense output block."""
    x = jnp.concatenate([xm_ref[0], xp_ref[0]], axis=0)             # (2C, TN)
    y = jnp.dot(w1_ref[...], x, preferred_element_type=jnp.float32) + b1_ref[...]
    y = jnp.maximum(y, 0.1 * y)
    y = y * s_ref[0]
    z = jnp.dot(w2_ref[...], y, preferred_element_type=jnp.float32) + b2_ref[...]
    out = x + z
    mag = out[:nc]
    pha = out[nc:]
    o_ref[0] = jnp.concatenate([mag * jnp.cos(pha), mag * jnp.sin(pha)], axis=0)


def ddnf_pallas(x, params, *, tile_n=2048,
                single_pass_vmem_budget=20 * 1024 * 1024,
                vmem_limit_bytes=32 * 1024 * 1024,
                force_two_pass=False):
    """x: (B, C, H, W) float32 (NCHW, matching the PyTorch module)."""
    assert tile_n % 128 == 0
    B, C, H, W = x.shape
    # TODO(synk): rfft2/irfft2 have no Pallas equivalent; they stay in XLA.
    # abs()/angle() also stay in XLA (atan2 lowering inside Mosaic is risky);
    # the concat/pad copies they used to feed are eliminated below.
    x_freq = jnp.fft.rfft2(x, norm="backward")                      # complex64
    Wf = x_freq.shape[-1]
    N = H * Wf
    mag = jnp.abs(x_freq).reshape(B, C, N).astype(jnp.float32)
    pha = jnp.angle(x_freq).reshape(B, C, N).astype(jnp.float32)

    C2 = 2 * C
    Cr2 = 2 * params["f1m"].shape[0]
    # Block-diagonal fusion of the mag / pha branch weights.
    w1 = _block_diag(params["w1m"], params["w1p"])                  # (2C, 2C)
    b1 = jnp.concatenate([params["b1m"], params["b1p"]], axis=0)    # (2C, 1)
    f1 = _block_diag(params["f1m"], params["f1p"])                  # (2Cr, 2C)
    f2 = _block_diag(params["f2m"], params["f2p"])                  # (2C, 2Cr)
    w2 = _block_diag(params["w2m"], params["w2p"])
    b2 = jnp.concatenate([params["b2m"], params["b2p"]], axis=0)

    # ~10 live (2C, N) f32 slabs (in/out double buffers + intermediates).
    # Budget is sized for v7x (64 MiB physical VMEM); raise on v5e/v6e.
    slab_bytes = 10 * C2 * N * 4
    use_single_pass = (not force_two_pass) and slab_bytes <= single_pass_vmem_budget

    if use_single_pass:
        full1 = lambda shp: pl.BlockSpec(shp, lambda b: (0, 0))
        out = pl.pallas_call(
            functools.partial(_single_pass_kernel, nc=C, n_valid=N),
            out_shape=jax.ShapeDtypeStruct((B, C2, N), jnp.float32),
            grid_spec=pltpu.PrefetchScalarGridSpec(
                num_scalar_prefetch=0,
                grid=(B,),
                in_specs=[pl.BlockSpec((1, C, N), lambda b: (b, 0, 0)),
                          pl.BlockSpec((1, C, N), lambda b: (b, 0, 0)),
                          full1((C2, C2)), full1((C2, 1)),
                          full1((Cr2, C2)), full1((C2, Cr2)),
                          full1((C2, C2)), full1((C2, 1))],
                out_specs=pl.BlockSpec((1, C2, N), lambda b: (b, 0, 0))),
            compiler_params=pltpu.CompilerParams(
                dimension_semantics=("parallel",),
                vmem_limit_bytes=vmem_limit_bytes),
        )(mag, pha, w1, b1, f1, f2, w2, b2)
    else:
        # Lane-dense, 128-aligned N tiling (bounded VMEM, unmasked stores).
        tn = min(tile_n, _round_up(N, 128))
        Np = _round_up(N, tn)
        n_pad = Np - N
        if n_pad:
            mag = jnp.pad(mag, ((0, 0), (0, 0), (0, n_pad)))
            pha = jnp.pad(pha, ((0, 0), (0, 0), (0, n_pad)))
        n_tiles = Np // tn

        full2 = lambda shp: pl.BlockSpec(shp, lambda b, n: (0, 0))
        x_spec = pl.BlockSpec((1, C, tn), lambda b, n: (b, 0, n))
        s_spec = pl.BlockSpec((1, C2, 1), lambda b, n: (b, 0, 0))
        o_spec = pl.BlockSpec((1, C2, tn), lambda b, n: (b, 0, n))

        # ---- phase 1: SE scale (pool is a reduction over the N-tile axis).
        # NOTE: s is written only on the last N-tile; correct with this
        # (B, n_tiles) axis order -- do not reorder the grid axes.
        s = pl.pallas_call(
            functools.partial(_se_scale_kernel, n_valid=N, n_pad=n_pad),
            out_shape=jax.ShapeDtypeStruct((B, C2, 1), jnp.float32),
            grid_spec=pltpu.PrefetchScalarGridSpec(
                num_scalar_prefetch=0,
                grid=(B, n_tiles),
                in_specs=[x_spec, x_spec, full2((C2, C2)), full2((C2, 1)),
                          full2((Cr2, C2)), full2((C2, Cr2))],
                out_specs=s_spec,
                scratch_shapes=[pltpu.VMEM((C2, 1), jnp.float32)]),
            compiler_params=pltpu.CompilerParams(
                dimension_semantics=("parallel", "arbitrary"),
                vmem_limit_bytes=vmem_limit_bytes),
        )(mag, pha, w1, b1, f1, f2)

        # ---- phase 2: apply SE + conv2 + residual + cos/sin, fully parallel,
        # single fused (B, 2C, Np) output (one DMA stream per step).
        out = pl.pallas_call(
            functools.partial(_apply_kernel, nc=C),
            out_shape=jax.ShapeDtypeStruct((B, C2, Np), jnp.float32),
            grid_spec=pltpu.PrefetchScalarGridSpec(
                num_scalar_prefetch=0,
                grid=(B, n_tiles),
                in_specs=[x_spec, x_spec, s_spec, full2((C2, C2)), full2((C2, 1)),
                          full2((C2, C2)), full2((C2, 1))],
                out_specs=o_spec),
            compiler_params=pltpu.CompilerParams(
                dimension_semantics=("parallel", "parallel"),
                vmem_limit_bytes=vmem_limit_bytes),
        )(mag, pha, s, w1, b1, w2, b2)

    real = out[:, :C, :N].reshape(B, C, H, Wf)
    imag = out[:, C:, :N].reshape(B, C, H, Wf)
    x_out = jax.lax.complex(real, imag)
    return jnp.fft.irfft2(x_out, s=(H, W), norm="backward")


def ddnf_reference(x, params):
    """Pure-JAX reference mirroring the PyTorch forward, for validation."""
    B, C, H, W = x.shape
    x_freq = jnp.fft.rfft2(x, norm="backward")
    Wf = x_freq.shape[-1]
    N = H * Wf
    ori_mag = jnp.abs(x_freq).reshape(B, C, N)
    ori_pha = jnp.angle(x_freq).reshape(B, C, N)

    def branch(xin, w1, b1, f1, f2, w2, b2):
        y = jnp.einsum("oc,bcn->bon", w1, xin) + b1[None]
        y = jnp.where(y >= 0, y, 0.1 * y)
        pooled = jnp.mean(y, axis=2, keepdims=True)
        h = jnp.maximum(jnp.einsum("rc,bco->bro", f1, pooled), 0.0)
        s = jax.nn.sigmoid(jnp.einsum("cr,bro->bco", f2, h))
        y = y * s
        z = jnp.einsum("oc,bcn->bon", w2, y) + b2[None]
        return xin + z

    mag = branch(ori_mag, params["w1m"], params["b1m"], params["f1m"],
                 params["f2m"], params["w2m"], params["b2m"])
    pha = branch(ori_pha, params["w1p"], params["b1p"], params["f1p"],
                 params["f2p"], params["w2p"], params["b2p"])
    x_out = (mag * jnp.cos(pha) + 1j * mag * jnp.sin(pha)).reshape(B, C, H, Wf)
    return jnp.fft.irfft2(x_out, s=(H, W), norm="backward")


def make_params(key, nc, reduction=16):
    """Deterministic synthetic parameters matching the PyTorch module shapes."""
    cr = max(nc // reduction, 1)
    keys = jax.random.split(key, 12)
    scale = 0.1

    def w(k, shape):
        return scale * jax.random.normal(k, shape, dtype=jnp.float32)

    return {
        "w1m": w(keys[0], (nc, nc)), "b1m": w(keys[1], (nc, 1)),
        "f1m": w(keys[2], (cr, nc)), "f2m": w(keys[3], (nc, cr)),
        "w2m": w(keys[4], (nc, nc)), "b2m": w(keys[5], (nc, 1)),
        "w1p": w(keys[6], (nc, nc)), "b1p": w(keys[7], (nc, 1)),
        "f1p": w(keys[8], (cr, nc)), "f2p": w(keys[9], (nc, cr)),
        "w2p": w(keys[10], (nc, nc)), "b2p": w(keys[11], (nc, 1)),
    }


if __name__ == "__main__":
    B, C, H, W = 2, 16, 16, 16          # nc=16 so SE reduction 16 -> hidden 1
    key = jax.random.PRNGKey(0)
    kx, kp = jax.random.split(key)
    x = jax.random.normal(kx, (B, C, H, W), dtype=jnp.float32)
    params = make_params(kp, C, reduction=16)

    ref = jax.block_until_ready(ddnf_reference(x, params))

    # Default path: single-pass resident-slab kernel.
    out1 = jax.block_until_ready(jax.jit(ddnf_pallas)(x, params))
    assert out1.shape == (B, C, H, W)
    np.testing.assert_allclose(np.asarray(out1), np.asarray(ref),
                               rtol=1e-4, atol=1e-4)

    # Also exercise the two-pass fallback (tile_n=128 -> 2 N-tiles, pad
    # correction and accumulation paths are covered).
    two_pass = jax.jit(functools.partial(ddnf_pallas, tile_n=128,
                                         force_two_pass=True))
    out2 = jax.block_until_ready(two_pass(x, params))
    np.testing.assert_allclose(np.asarray(out2), np.asarray(ref),
                               rtol=1e-4, atol=1e-4)

    print("KERNEL_OK")
</pallas_src>

<mosaic_0001>
module attributes {stable_mosaic.version = 11 : i64} {
  func.func @_single_pass_kernel(%arg0: i32, %arg1: memref<1x16x144xf32, #tpu.memory_space<vmem>>, %arg2: memref<1x16x144xf32, #tpu.memory_space<vmem>>, %arg3: memref<32x32xf32, #tpu.memory_space<vmem>>, %arg4: memref<32x1xf32, #tpu.memory_space<vmem>>, %arg5: memref<2x32xf32, #tpu.memory_space<vmem>>, %arg6: memref<32x2xf32, #tpu.memory_space<vmem>>, %arg7: memref<32x32xf32, #tpu.memory_space<vmem>>, %arg8: memref<32x1xf32, #tpu.memory_space<vmem>>, %arg9: memref<1x32x144xf32, #tpu.memory_space<vmem>>) attributes {dimension_semantics = [#tpu.dimension_semantics<parallel>], iteration_bounds = array<i64: 2>, scalar_prefetch = 0 : i64, scratch_operands = 0 : i64, tpu.core_type = #tpu.core_type<tc>, window_params = [{transform_indices = @transform_0, window_bounds = array<i64: 1, 16, 144>}, {transform_indices = @transform_1, window_bounds = array<i64: 1, 16, 144>}, {pipeline_mode = #tpu.pipeline_mode<synchronous>, transform_indices = @transform_2, window_bounds = array<i64: 32, 32>}, {pipeline_mode = #tpu.pipeline_mode<synchronous>, transform_indices = @transform_3, window_bounds = array<i64: 32, 1>}, {pipeline_mode = #tpu.pipeline_mode<synchronous>, transform_indices = @transform_4, window_bounds = array<i64: 2, 32>}, {pipeline_mode = #tpu.pipeline_mode<synchronous>, transform_indices = @transform_5, window_bounds = array<i64: 32, 2>}, {pipeline_mode = #tpu.pipeline_mode<synchronous>, transform_indices = @transform_6, window_bounds = array<i64: 32, 32>}, {pipeline_mode = #tpu.pipeline_mode<synchronous>, transform_indices = @transform_7, window_bounds = array<i64: 32, 1>}, {transform_indices = @transform_8, window_bounds = array<i64: 1, 32, 144>}]} {
    %c0 = arith.constant 0 : index
    %c0_0 = arith.constant 0 : index
    %c0_1 = arith.constant 0 : index
    %0 = vector.load %arg1[%c0, %c0_0, %c0_1] : memref<1x16x144xf32, #tpu.memory_space<vmem>>, vector<1x16x144xf32>
    %1 = vector.shape_cast %0 : vector<1x16x144xf32> to vector<16x144xf32>
    %c0_2 = arith.constant 0 : index
    %c0_3 = arith.constant 0 : index
    %c0_4 = arith.constant 0 : index
    %2 = vector.load %arg2[%c0_2, %c0_3, %c0_4] : memref<1x16x144xf32, #tpu.memory_space<vmem>>, vector<1x16x144xf32>
    %3 = vector.shape_cast %2 : vector<1x16x144xf32> to vector<16x144xf32>
    %4 = tpu.concatenate %1, %3 in 0 : vector<16x144xf32>, vector<16x144xf32> -> vector<32x144xf32>
    %c0_5 = arith.constant 0 : index
    %c0_6 = arith.constant 0 : index
    %5 = vector.load %arg3[%c0_5, %c0_6] : memref<32x32xf32, #tpu.memory_space<vmem>>, vector<32x32xf32>
    %cst = arith.constant dense<0.000000e+00> : vector<32x144xf32>
    %6 = tpu.matmul %5, %4, %cst {dimension_numbers = #tpu.dot_dimension_numbers<[1], [0], [0], [1], [0, 0, 1, 1], [], []>} : vector<32x32xf32>, vector<32x144xf32>, vector<32x144xf32> -> vector<32x144xf32>
    %c0_7 = arith.constant 0 : index
    %c0_8 = arith.constant 0 : index
    %7 = vector.load %arg4[%c0_7, %c0_8] : memref<32x1xf32, #tpu.memory_space<vmem>>, vector<32x1xf32>
    %8 = vector.broadcast %7 : vector<32x1xf32> to vector<32x144xf32>
    %9 = arith.addf %6, %8 : vector<32x144xf32>
    %cst_9 = arith.constant 1.000000e-01 : f32
    %10 = vector.broadcast %cst_9 : f32 to vector<32x144xf32>
    %11 = arith.mulf %10, %9 : vector<32x144xf32>
    %12 = arith.maximumf %9, %11 : vector<32x144xf32>
    %cst_10 = arith.constant dense<0.000000e+00> : vector<32xf32>
    %13 = vector.multi_reduction <add>, %12, %cst_10 [1] : vector<32x144xf32> to vector<32xf32>
    %14 = vector.shape_cast %13 : vector<32xf32> to vector<32x1xf32>
    %cst_11 = arith.constant 0.0069444445 : f32
    %15 = vector.broadcast %cst_11 : f32 to vector<32x1xf32>
    %16 = arith.mulf %14, %15 : vector<32x1xf32>
    %c0_12 = arith.constant 0 : index
    %c0_13 = arith.constant 0 : index
    %17 = vector.load %arg5[%c0_12, %c0_13] : memref<2x32xf32, #tpu.memory_space<vmem>>, vector<2x32xf32>
    %cst_14 = arith.constant dense<0.000000e+00> : vector<2x1xf32>
    %18 = tpu.matmul %17, %16, %cst_14 {dimension_numbers = #tpu.dot_dimension_numbers<[1], [0], [0], [1], [0, 0, 1, 1], [], []>} : vector<2x32xf32>, vector<32x1xf32>, vector<2x1xf32> -> vector<2x1xf32>
    %cst_15 = arith.constant 0.000000e+00 : f32
    %19 = vector.broadcast %cst_15 : f32 to vector<2x1xf32>
    %20 = arith.maximumf %18, %19 : vector<2x1xf32>
    %c0_16 = arith.constant 0 : index
    %c0_17 = arith.constant 0 : index
    %21 = vector.load %arg6[%c0_16, %c0_17] : memref<32x2xf32, #tpu.memory_space<vmem>>, vector<32x2xf32>
    %cst_18 = arith.constant dense<0.000000e+00> : vector<32x1xf32>
    %22 = tpu.matmul %21, %20, %cst_18 {dimension_numbers = #tpu.dot_dimension_numbers<[1], [0], [0], [1], [0, 0, 1, 1], [], []>} : vector<32x2xf32>, vector<2x1xf32>, vector<32x1xf32> -> vector<32x1xf32>
    %23 = arith.negf %22 : vector<32x1xf32>
    %24 = math.exp %23 : vector<32x1xf32>
    %cst_19 = arith.constant 1.000000e+00 : f32
    %25 = vector.broadcast %cst_19 : f32 to vector<32x1xf32>
    %26 = arith.addf %25, %24 : vector<32x1xf32>
    %27 = arith.divf %25, %26 : vector<32x1xf32>
    %28 = vector.broadcast %27 : vector<32x1xf32> to vector<32x144xf32>
    %29 = arith.mulf %12, %28 : vector<32x144xf32>
    %c0_20 = arith.constant 0 : index
    %c0_21 = arith.constant 0 : index
    %30 = vector.load %arg7[%c0_20, %c0_21] : memref<32x32xf32, #tpu.memory_space<vmem>>, vector<32x32xf32>
    %cst_22 = arith.constant dense<0.000000e+00> : vector<32x144xf32>
    %31 = tpu.matmul %30, %29, %cst_22 {dimension_numbers = #tpu.dot_dimension_numbers<[1], [0], [0], [1], [0, 0, 1, 1], [], []>} : vector<32x32xf32>, vector<32x144xf32>, vector<32x144xf32> -> vector<32x144xf32>
    %c0_23 = arith.constant 0 : index
    %c0_24 = arith.constant 0 : index
    %32 = vector.load %arg8[%c0_23, %c0_24] : memref<32x1xf32, #tpu.memory_space<vmem>>, vector<32x1xf32>
    %33 = vector.broadcast %32 : vector<32x1xf32> to vector<32x144xf32>
    %34 = arith.addf %31, %33 : vector<32x144xf32>
    %35 = arith.addf %4, %34 : vector<32x144xf32>
    %36 = vector.extract_strided_slice %35 {offsets = [0, 0], sizes = [16, 144], strides = [1, 1]} : vector<32x144xf32> to vector<16x144xf32>
    %37 = vector.extract_strided_slice %35 {offsets = [16, 0], sizes = [16, 144], strides = [1, 1]} : vector<32x144xf32> to vector<16x144xf32>
    %38 = math.cos %37 : vector<16x144xf32>
    %39 = arith.mulf %36, %38 : vector<16x144xf32>
    %40 = math.sin %37 : vector<16x144xf32>
    %41 = arith.mulf %36, %40 : vector<16x144xf32>
    %42 = tpu.concatenate %39, %41 in 0 : vector<16x144xf32>, vector<16x144xf32> -> vector<32x144xf32>
    %c0_25 = arith.constant 0 : index
    %c0_26 = arith.constant 0 : index
    %c0_27 = arith.constant 0 : index
    %43 = vector.load %arg9[%c0_25, %c0_26, %c0_27] : memref<1x32x144xf32, #tpu.memory_space<vmem>>, vector<1x32x144xf32>
    %44 = vector.shape_cast %43 : vector<1x32x144xf32> to vector<32x144xf32>
    %45 = vector.shape_cast %42 : vector<32x144xf32> to vector<1x32x144xf32>
    tpu.vector_store %arg9[%c0_25, %c0_26, %c0_27], %45 {strides = array<i32>} : memref<1x32x144xf32, #tpu.memory_space<vmem>>, vector<1x32x144xf32>,
    return
  }
  func.func @transform_0(%arg0: i32) -> (i32, i32, i32) {
    %c0_i32 = arith.constant 0 : i32
    %c0_i32_0 = arith.constant 0 : i32
    %c0_i32_1 = arith.constant 0 : i32
    return %arg0, %c0_i32, %c0_i32_0 : i32, i32, i32
  }
  func.func @transform_1(%arg0: i32) -> (i32, i32, i32) {
    %c0_i32 = arith.constant 0 : i32
    %c0_i32_0 = arith.constant 0 : i32
    %c0_i32_1 = arith.constant 0 : i32
    return %arg0, %c0_i32, %c0_i32_0 : i32, i32, i32
  }
  func.func @transform_2(%arg0: i32) -> (i32, i32) {
    %c0_i32 = arith.constant 0 : i32
    %c0_i32_0 = arith.constant 0 : i32
    %c0_i32_1 = arith.constant 0 : i32
    return %c0_i32, %c0_i32_0 : i32, i32
  }
  func.func @transform_3(%arg0: i32) -> (i32, i32) {
    %c0_i32 = arith.constant 0 : i32
    %c0_i32_0 = arith.constant 0 : i32
    %c0_i32_1 = arith.constant 0 : i32
    return %c0_i32, %c0_i32_0 : i32, i32
  }
  func.func @transform_4(%arg0: i32) -> (i32, i32) {
    %c0_i32 = arith.constant 0 : i32
    %c0_i32_0 = arith.constant 0 : i32
    %c0_i32_1 = arith.constant 0 : i32
    return %c0_i32, %c0_i32_0 : i32, i32
  }
  func.func @transform_5(%arg0: i32) -> (i32, i32) {
    %c0_i32 = arith.constant 0 : i32
    %c0_i32_0 = arith.constant 0 : i32
    %c0_i32_1 = arith.constant 0 : i32
    return %c0_i32, %c0_i32_0 : i32, i32
  }
  func.func @transform_6(%arg0: i32) -> (i32, i32) {
    %c0_i32 = arith.constant 0 : i32
    %c0_i32_0 = arith.constant 0 : i32
    %c0_i32_1 = arith.constant 0 : i32
    return %c0_i32, %c0_i32_0 : i32, i32
  }
  func.func @transform_7(%arg0: i32) -> (i32, i32) {
    %c0_i32 = arith.constant 0 : i32
    %c0_i32_0 = arith.constant 0 : i32
    %c0_i32_1 = arith.constant 0 : i32
    return %c0_i32, %c0_i32_0 : i32, i32
  }
  func.func @transform_8(%arg0: i32) -> (i32, i32, i32) {
    %c0_i32 = arith.constant 0 : i32
    %c0_i32_0 = arith.constant 0 : i32
    %c0_i32_1 = arith.constant 0 : i32
    return %arg0, %c0_i32, %c0_i32_0 : i32, i32, i32
  }
}

</mosaic_0001>

<llo_original>
// kernel: ddnf_pallas.1
$region0: #{ddnf_pallas.1}
  #allocation0 [shape = 'u32[]', space=smem, size = 0x4, offset = 0x4, fixed_abs, tag = 'smem constant byte address 0x4 - core index']
  #allocation1 [shape = 'u32[72,128]{1,0:T(1,128)}', space=vmem, size = 0x9000, scoped, tag = 'internal scratch']
  %s0 = inlined_call_operand.vmem [shape: f32[2,16,144], index: 0, kind: input, shape index: {}]
  %s1 = inlined_call_operand.vmem [shape: f32[2,16,144], index: 1, kind: input, shape index: {}]
  %s2 = inlined_call_operand.vmem [shape: f32[32,32], index: 2, kind: input, shape index: {}]
  %s3 = inlined_call_operand.vmem [shape: f32[32,1], index: 3, kind: input, shape index: {}]
  %s4 = inlined_call_operand.vmem [shape: f32[2,32], index: 4, kind: input, shape index: {}]
  %s5 = inlined_call_operand.vmem [shape: f32[32,2], index: 5, kind: input, shape index: {}]
  %s6 = inlined_call_operand.vmem [shape: f32[32,32], index: 6, kind: input, shape index: {}]
  %s7 = inlined_call_operand.vmem [shape: f32[32,1], index: 7, kind: input, shape index: {}]
  %s8 = inlined_call_operand.vmem [shape: f32[2,32,144], index: 8, kind: output, shape index: {}]
  %s9 = sld [smem:[#allocation0]]
  $region65: #{ddnf_pallas.1} parent=0
    _
  %s11 = ssub.s32 1, %s9
  %s12 = scalar_select 0, %s11, %s9
  loop: start=0, step=1, limit=4
  $region2: #{ddnf_pallas.1} parent=0 // loop_pre_header
    _
  $region3: #{ddnf_pallas.1} parent=0 // loop_header
    %s14 = sphi 0, %s18
    %p15 = scmp.ge.s32.totalorder %s14, 4
    %s24 = sphi 0, %s26
    %s27 = sphi 0, %s24
    %s28 = sphi 0, %s27
    %s44 = sphi 0, %s28
    %s50 = sphi 0, %s52
    %s53 = sphi 0, %s50
    %s54 = sphi 0, %s53
    %s70 = sphi 0, %s54
    %s74 = sphi 0, %s74
    %s76 = sphi 0, %s74
    %s77 = sphi 0, %s76
    %s91 = sphi 0, %s77
    %s95 = sphi 0, %s95
    %s97 = sphi 0, %s95
    %s98 = sphi 0, %s97
    %s112 = sphi 0, %s98
    %s116 = sphi 0, %s116
    %s118 = sphi 0, %s116
    %s119 = sphi 0, %s118
    %s133 = sphi 0, %s119
    %s137 = sphi 0, %s137
    %s139 = sphi 0, %s137
    %s140 = sphi 0, %s139
    %s154 = sphi 0, %s140
    %s158 = sphi 0, %s158
    %s160 = sphi 0, %s158
    %s161 = sphi 0, %s160
    %s175 = sphi 0, %s161
    %s179 = sphi 0, %s179
    %s181 = sphi 0, %s179
    %s182 = sphi 0, %s181
    %s196 = sphi 0, %s182
    %s202 = sphi 0, %s204
    %s205 = sphi 0, %s202
    %s206 = sphi 0, %s205
    %s222 = sphi 0, %s206
  $region4: #{ddnf_pallas.1} parent=0 // loop_header_branch
    %17 = sbr.rel (%p15) target = $region8
  $region5: #{ddnf_pallas.1} parent=0 // loop_body
    %s19 = ssub.s32 %s14, 1
    %s20 = ssub.s32 %s14, 2
    %s21 = sadd.s32 %s14, 1
    %s22 = ssub.s32 %s14, %s21
    %p23 = scmp.eq.s32.totalorder %s22, 0
    %s25 = sadd.s32 %s24, 1
    %s26 = scalar_select %p23, %s24, %s25
    %p29 = pneg %p23
    %p30 = scmp.eq.s32.totalorder %s14, 1
    %p31 = por %p29, %p30
    %p32 = scmp.ne.s32.totalorder %s24, %s27
    %p33 = scmp.eq.s32.totalorder %s14, 0
    %p34 = por %p32, %p33
    %p35 = scmp.ne.s32.totalorder %s24, %s27
    %p36 = scmp.eq.s32.totalorder %s19, 1
    %p37 = por %p35, %p36
    %p38 = scmp.ne.s32.totalorder %s27, %s28
    %p39 = scmp.eq.s32.totalorder %s19, 0
    %p40 = por %p38, %p39
    %p41 = scmp.ne.s32.totalorder %s27, %s28
    %p42 = scmp.eq.s32.totalorder %s20, 1
    %p43 = por %p41, %p42
    %p45 = scmp.ne.s32.totalorder %s28, %s44
    %p46 = scmp.eq.s32.totalorder %s20, 0
    %p47 = por %p45, %p46
    %s48 = ssub.s32 %s14, %s21
    %p49 = scmp.eq.s32.totalorder %s48, 0
    %s51 = sadd.s32 %s50, 1
    %s52 = scalar_select %p49, %s50, %s51
    %p55 = pneg %p49
    %p56 = scmp.eq.s32.totalorder %s14, 1
    %p57 = por %p55, %p56
    %p58 = scmp.ne.s32.totalorder %s50, %s53
    %p59 = scmp.eq.s32.totalorder %s14, 0
    %p60 = por %p58, %p59
    %p61 = scmp.ne.s32.totalorder %s50, %s53
    %p62 = scmp.eq.s32.totalorder %s19, 1
    %p63 = por %p61, %p62
    %p64 = scmp.ne.s32.totalorder %s53, %s54
    %p65 = scmp.eq.s32.totalorder %s19, 0
    %p66 = por %p64, %p65
    %p67 = scmp.ne.s32.totalorder %s53, %s54
    %p68 = scmp.eq.s32.totalorder %s20, 1
    %p69 = por %p67, %p68
    %p71 = scmp.ne.s32.totalorder %s54, %s70
    %p72 = scmp.eq.s32.totalorder %s20, 0
    %p73 = por %p71, %p72
    %s75 = sadd.s32 %s74, 1
    %p78 = scmp.eq.s32.totalorder %s14, 1
    %p79 = scmp.ne.s32.totalorder %s74, %s76
    %p80 = scmp.eq.s32.totalorder %s14, 0
    %p81 = por %p79, %p80
    %p82 = scmp.ne.s32.totalorder %s74, %s76
    %p83 = scmp.eq.s32.totalorder %s19, 1
    %p84 = por %p82, %p83
    %p85 = scmp.ne.s32.totalorder %s76, %s77
    %p86 = scmp.eq.s32.totalorder %s19, 0
    %p87 = por %p85, %p86
    %p88 = scmp.ne.s32.totalorder %s76, %s77
    %p89 = scmp.eq.s32.totalorder %s20, 1
    %p90 = por %p88, %p89
    %p92 = scmp.ne.s32.totalorder %s77, %s91
    %p93 = scmp.eq.s32.totalorder %s20, 0
    %p94 = por %p92, %p93
    %s96 = sadd.s32 %s95, 1
    %p99 = scmp.eq.s32.totalorder %s14, 1
    %p100 = scmp.ne.s32.totalorder %s95, %s97
    %p101 = scmp.eq.s32.totalorder %s14, 0
    %p102 = por %p100, %p101
    %p103 = scmp.ne.s32.totalorder %s95, %s97
    %p104 = scmp.eq.s32.totalorder %s19, 1
    %p105 = por %p103, %p104
    %p106 = scmp.ne.s32.totalorder %s97, %s98
    %p107 = scmp.eq.s32.totalorder %s19, 0
    %p108 = por %p106, %p107
    %p109 = scmp.ne.s32.totalorder %s97, %s98
    %p110 = scmp.eq.s32.totalorder %s20, 1
    %p111 = por %p109, %p110
    %p113 = scmp.ne.s32.totalorder %s98, %s112
    %p114 = scmp.eq.s32.totalorder %s20, 0
    %p115 = por %p113, %p114
    %s117 = sadd.s32 %s116, 1
    %p120 = scmp.eq.s32.totalorder %s14, 1
    %p121 = scmp.ne.s32.totalorder %s116, %s118
    %p122 = scmp.eq.s32.totalorder %s14, 0
    %p123 = por %p121, %p122
    %p124 = scmp.ne.s32.totalorder %s116, %s118
    %p125 = scmp.eq.s32.totalorder %s19, 1
    %p126 = por %p124, %p125
    %p127 = scmp.ne.s32.totalorder %s118, %s119
    %p128 = scmp.eq.s32.totalorder %s19, 0
    %p129 = por %p127, %p128
    %p130 = scmp.ne.s32.totalorder %s118, %s119
    %p131 = scmp.eq.s32.totalorder %s20, 1
    %p132 = por %p130, %p131
    %p134 = scmp.ne.s32.totalorder %s119, %s133
    %p135 = scmp.eq.s32.totalorder %s20, 0
    %p136 = por %p134, %p135
    %s138 = sadd.s32 %s137, 1
    %p141 = scmp.eq.s32.totalorder %s14, 1
    %p142 = scmp.ne.s32.totalorder %s137, %s139
    %p143 = scmp.eq.s32.totalorder %s14, 0
    %p144 = por %p142, %p143
    %p145 = scmp.ne.s32.totalorder %s137, %s139
    %p146 = scmp.eq.s32.totalorder %s19, 1
    %p147 = por %p145, %p146
    %p148 = scmp.ne.s32.totalorder %s139, %s140
    %p149 = scmp.eq.s32.totalorder %s19, 0
    %p150 = por %p148, %p149
    %p151 = scmp.ne.s32.totalorder %s139, %s140
    %p152 = scmp.eq.s32.totalorder %s20, 1
    %p153 = por %p151, %p152
    %p155 = scmp.ne.s32.totalorder %s140, %s154
    %p156 = scmp.eq.s32.totalorder %s20, 0
    %p157 = por %p155, %p156
    %s159 = sadd.s32 %s158, 1
    %p162 = scmp.eq.s32.totalorder %s14, 1
    %p163 = scmp.ne.s32.totalorder %s158, %s160
    %p164 = scmp.eq.s32.totalorder %s14, 0
    %p165 = por %p163, %p164
    %p166 = scmp.ne.s32.totalorder %s158, %s160
    %p167 = scmp.eq.s32.totalorder %s19, 1
    %p168 = por %p166, %p167
    %p169 = scmp.ne.s32.totalorder %s160, %s161
    %p170 = scmp.eq.s32.totalorder %s19, 0
    %p171 = por %p169, %p170
    %p172 = scmp.ne.s32.totalorder %s160, %s161
    %p173 = scmp.eq.s32.totalorder %s20, 1
    %p174 = por %p172, %p173
    %p176 = scmp.ne.s32.totalorder %s161, %s175
    %p177 = scmp.eq.s32.totalorder %s20, 0
    %p178 = por %p176, %p177
    %s180 = sadd.s32 %s179, 1
    %p183 = scmp.eq.s32.totalorder %s14, 1
    %p184 = scmp.ne.s32.totalorder %s179, %s181
    %p185 = scmp.eq.s32.totalorder %s14, 0
    %p186 = por %p184, %p185
    %p187 = scmp.ne.s32.totalorder %s179, %s181
    %p188 = scmp.eq.s32.totalorder %s19, 1
    %p189 = por %p187, %p188
    %p190 = scmp.ne.s32.totalorder %s181, %s182
    %p191 = scmp.eq.s32.totalorder %s19, 0
    %p192 = por %p190, %p191
    %p193 = scmp.ne.s32.totalorder %s181, %s182
    %p194 = scmp.eq.s32.totalorder %s20, 1
    %p195 = por %p193, %p194
    %p197 = scmp.ne.s32.totalorder %s182, %s196
    %p198 = scmp.eq.s32.totalorder %s20, 0
    %p199 = por %p197, %p198
    %s200 = ssub.s32 %s14, %s21
    %p201 = scmp.eq.s32.totalorder %s200, 0
    %s203 = sadd.s32 %s202, 1
    %s204 = scalar_select %p201, %s202, %s203
    %p207 = pneg %p201
    %p208 = scmp.eq.s32.totalorder %s14, 1
    %p209 = por %p207, %p208
    %p210 = scmp.ne.s32.totalorder %s202, %s205
    %p211 = scmp.eq.s32.totalorder %s14, 0
    %p212 = por %p210, %p211
    %p213 = scmp.ne.s32.totalorder %s202, %s205
    %p214 = scmp.eq.s32.totalorder %s19, 1
    %p215 = por %p213, %p214
    %p216 = scmp.ne.s32.totalorder %s205, %s206
    %p217 = scmp.eq.s32.totalorder %s19, 0
    %p218 = por %p216, %p217
    %p219 = scmp.ne.s32.totalorder %s205, %s206
    %p220 = scmp.eq.s32.totalorder %s20, 1
    %p221 = por %p219, %p220
    %p223 = scmp.ne.s32.totalorder %s206, %s222
    %p224 = scmp.eq.s32.totalorder %s20, 0
    %p225 = por %p223, %p224
    %p226 = scmp.le.s32.totalorder 1, %s14
    %p227 = scmp.lt.s32.totalorder %s14, 3
    %p228 = pnand %p226, %p227
    %p229 = pneg %p228
    // Predicated region
    $region9: #{ddnf_pallas.1} parent=5 // pred_check
      _
    $region10: #{ddnf_pallas.1} parent=5 // pred_check_branch
      %231 = sbr.rel (%p228) target = $region12
    $region11: #{ddnf_pallas.1} parent=5 // pred_region
      %s232 = ssub.s32 %s14, 1
      // Predicated region
      $region13: #{ddnf_pallas.1} parent=11 // pred_check
        %p233 = pneg %p87
      $region14: #{ddnf_pallas.1} parent=11 // pred_check_branch
        %235 = sbr.rel (%p233) target = $region16
      $region15: #{ddnf_pallas.1} parent=11 // pred_region
        _
      $region16: #{ddnf_pallas.1} parent=11 // pred_fallthru
        _
      // Predicated region
      $region17: #{ddnf_pallas.1} parent=11 // pred_check
        %p236 = pneg %p108
      $region18: #{ddnf_pallas.1} parent=11 // pred_check_branch
        %238 = sbr.rel (%p236) target = $region20
      $region19: #{ddnf_pallas.1} parent=11 // pred_region
        _
      $region20: #{ddnf_pallas.1} parent=11 // pred_fallthru
        _
      // Predicated region
      $region21: #{ddnf_pallas.1} parent=11 // pred_check
        %p239 = pneg %p129
      $region22: #{ddnf_pallas.1} parent=11 // pred_check_branch
        %241 = sbr.rel (%p239) target = $region24
      $region23: #{ddnf_pallas.1} parent=11 // pred_region
        _
      $region24: #{ddnf_pallas.1} parent=11 // pred_fallthru
        _
      // Predicated region
      $region25: #{ddnf_pallas.1} parent=11 // pred_check
        %p242 = pneg %p150
      $region26: #{ddnf_pallas.1} parent=11 // pred_check_branch
        %244 = sbr.rel (%p242) target = $region28
      $region27: #{ddnf_pallas.1} parent=11 // pred_region
        _
      $region28: #{ddnf_pallas.1} parent=11 // pred_fallthru
        _
      // Predicated region
      $region29: #{ddnf_pallas.1} parent=11 // pred_check
        %p245 = pneg %p171
      $region30: #{ddnf_pallas.1} parent=11 // pred_check_branch
        %247 = sbr.rel (%p245) target = $region32
      $region31: #{ddnf_pallas.1} parent=11 // pred_region
        _
      $region32: #{ddnf_pallas.1} parent=11 // pred_fallthru
        _
      // Predicated region
      $region33: #{ddnf_pallas.1} parent=11 // pred_check
        %p248 = pneg %p192
      $region34: #{ddnf_pallas.1} parent=11 // pred_check_branch
        %250 = sbr.rel (%p248) target = $region36
      $region35: #{ddnf_pallas.1} parent=11 // pred_region
        _
      $region36: #{ddnf_pallas.1} parent=11 // pred_fallthru
        _
    $region12: #{ddnf_pallas.1} parent=5 // pred_fallthru
      _
    %p251 = scmp.lt.s32.totalorder %s14, 2
    // Predicated region
    $region37: #{ddnf_pallas.1} parent=5 // pred_check
      %p252 = pneg %p251
    $region38: #{ddnf_pallas.1} parent=5 // pred_check_branch
      %254 = sbr.rel (%p252) target = $region40
    $region39: #{ddnf_pallas.1} parent=5 // pred_region
      // Predicated region
      $region41: #{ddnf_pallas.1} parent=39 // pred_check
        %p255 = pneg %p34
      $region42: #{ddnf_pallas.1} parent=39 // pred_check_branch
        %257 = sbr.rel (%p255) target = $region44
      $region43: #{ddnf_pallas.1} parent=39 // pred_region
        %p258 = scmp.lt.s32.totalorder %s14, 1
        %s259 = scalar_select %p258, %s14, 1
        %s260 = smul.addr %s259, 4
        %s261 = smul.addr %s260, 8
        %s262 = scalar_lea.vmem %s0, %s261
      $region44: #{ddnf_pallas.1} parent=39 // pred_fallthru
        _
      // Predicated region
      $region45: #{ddnf_pallas.1} parent=39 // pred_check
        %p263 = pneg %p60
      $region46: #{ddnf_pallas.1} parent=39 // pred_check_branch
        %265 = sbr.rel (%p263) target = $region48
      $region47: #{ddnf_pallas.1} parent=39 // pred_region
        %p266 = scmp.lt.s32.totalorder %s14, 1
        %s267 = scalar_select %p266, %s14, 1
        %s268 = smul.addr %s267, 4
        %s269 = smul.addr %s268, 8
        %s270 = scalar_lea.vmem %s1, %s269
      $region48: #{ddnf_pallas.1} parent=39 // pred_fallthru
        _
    $region40: #{ddnf_pallas.1} parent=5 // pred_fallthru
      _
    %p271 = scmp.le.s32.totalorder 1, %s14
    %p272 = scmp.lt.s32.totalorder %s14, 3
    %p273 = pnand %p271, %p272
    %p274 = pneg %p273
    // Predicated region
    $region49: #{ddnf_pallas.1} parent=5 // pred_check
      _
    $region50: #{ddnf_pallas.1} parent=5 // pred_check_branch
      %276 = sbr.rel (%p273) target = $region52
    $region51: #{ddnf_pallas.1} parent=5 // pred_region
      %s277 = ssub.s32 %s14, 1
      %p278 = scmp.lt.s32.totalorder %s19, 1
      %s279 = scalar_select %p278, %s19, 1
      %s280 = smul.addr %s279, 4
      %s281 = smul.addr %s280, 8
      %s282 = scalar_lea.vmem %s0, %s281
      %p283 = pneg %p40
      %p284 = pneg %p37
      %p285 = scmp.lt.s32.totalorder %s19, 1
      %s286 = scalar_select %p285, %s19, 1
      %s287 = smul.addr %s286, 4
      %s288 = smul.addr %s287, 8
      %s289 = scalar_lea.vmem %s1, %s288
      %p290 = pneg %p66
      %p291 = pneg %p63
      %p292 = pneg %p87
      %p293 = pneg %p84
      %p294 = pneg %p108
      %p295 = pneg %p105
      %p296 = pneg %p129
      %p297 = pneg %p126
      %p298 = pneg %p150
      %p299 = pneg %p147
      %p300 = pneg %p171
      %p301 = pneg %p168
      %p302 = pneg %p192
      %p303 = pneg %p189
      %p304 = pneg %p218
      %p305 = pneg %p215
      %p306 = scmp.lt.s32.totalorder %s19, 1
      %s307 = scalar_select %p306, %s19, 1
      %s308 = smul.addr %s307, 8
      %s309 = smul.addr %s308, 8
      %s310 = scalar_lea.vmem %s8, %s309
      %p311 = scmp.lt.s32.totalorder %s19, 1
      %s312 = scalar_select %p311, %s19, 1
      %s313 = smul.addr %s312, 4
      %s314 = smul.addr %s313, 8
      %s315 = scalar_lea.vmem %s0, %s314
      %p316 = scmp.lt.s32.totalorder %s19, 1
      %s317 = scalar_select %p316, %s19, 1
      %s318 = smul.addr %s317, 4
      %s319 = smul.addr %s318, 8
      %s320 = scalar_lea.vmem %s1, %s319
      %p321 = scmp.lt.s32.totalorder %s19, 1
      %s322 = scalar_select %p321, %s19, 1
      %s323 = smul.addr %s322, 8
      %s324 = smul.addr %s323, 8
      %s325 = scalar_lea.vmem %s8, %s324
      %v326 = vld [vmem:[%s315] sm:$0xff]
      %v327 = vld [vmem:[%s315 + $0x8] sm:$0xff]
      %v328 = vld [vmem:[%s315 + $0x10] sm:$0xff]
      %v329 = vld [vmem:[%s315 + $0x18] sm:$0xff]
      %v330 = vld [vmem:[%s320] sm:$0xff]
      %v331 = vld [vmem:[%s320 + $0x8] sm:$0xff]
      %v332 = vld [vmem:[%s320 + $0x10] sm:$0xff]
      %v333 = vld [vmem:[%s320 + $0x18] sm:$0xff]
      %v334 = vld [vmem:[%s2] sm:$0xff]
      %v335 = vld [vmem:[%s2 + $0x8] sm:$0xff]
      %v336 = vld [vmem:[%s2 + $0x10] sm:$0xff]
      %v337 = vld [vmem:[%s2 + $0x18] sm:$0xff]
      %v338 = vld [vmem:[%s3] sm:$0xff]
      %v339 = vld [vmem:[%s3 + $0x8] sm:$0xff]
      %v340 = vld [vmem:[%s3 + $0x10] sm:$0xff]
      %v341 = vld [vmem:[%s3 + $0x18] sm:$0xff]
      %343 = vset.pattern.permute.xlu0 0
      %344 = vperm.xlu0 %343, %v338
      %v345 = vpop.permute.xlu0 %344
      %348 = vset.pattern.permute.xlu0 0
      %349 = vperm.xlu0 %348, %v339
      %v350 = vpop.permute.xlu0 %349
      %353 = vset.pattern.permute.xlu0 0
      %354 = vperm.xlu0 %353, %v340
      %v355 = vpop.permute.xlu0 %354
      %358 = vset.pattern.permute.xlu0 0
      %359 = vperm.xlu0 %358, %v341
      %v360 = vpop.permute.xlu0 %359
      %vm362 = vcmask 261120
      %v364 = vsel %vm362, %v334, 0
      %v367 = vsel %vm362, %v335, 0
      %v370 = vsel %vm362, %v336, 0
      %v373 = vsel %vm362, %v337, 0
      %375 = vmatpush.msra.mxu0 0.0
      %376 = vmatpush.msra.mxu0 0.0
      %377 = vmatpush.msra.mxu0 0.0
      %378 = vmatpush.msra.mxu0 0.0
      %379 = vmatpush.msra.mxu0 0.0
      %380 = vmatpush.msra.mxu0 0.0
      %381 = vmatpush.msra.mxu0 0.0
      %382 = vmatpush.msra.mxu0 0.0
      %383 = vmatpush.msra.mxu0 0.0
      %384 = vmatpush.msra.mxu0 0.0
      %385 = vmatpush.msra.mxu0 0.0
      %386 = vmatpush.msra.mxu0 0.0
      %387 = vmatpush.msra.mxu0 %v332
      %388 = vmatpush.msra.mxu0 %v330
      %389 = vmatpush.msra.mxu0 %v328
      %390 = vmatpush.msra.mxu0 %v326
      %391 = vmatmul.f32.gmra.mxu0 %v364
      %v392 = vpop.f32.mrf.mxu0
      %v393 = vadd.f32 %v345, %v392
      %394 = vmatmul.f32.gmra.mxu0 %v367
      %v395 = vpop.f32.mrf.mxu0
      %v396 = vadd.f32 %v350, %v395
      %397 = vmatmul.f32.gmra.mxu0 %v370
      %v398 = vpop.f32.mrf.mxu0
      %v399 = vadd.f32 %v355, %v398
      %400 = vmatmul.f32.gmra.mxu0 %v373
      %v401 = vpop.f32.mrf.mxu0
      %v402 = vadd.f32 %v360, %v401
      %403 = vdwg.mxu0
      %404 = vmatpush.msra.mxu0 0.0
      %405 = vmatpush.msra.mxu0 0.0
      %406 = vmatpush.msra.mxu0 0.0
      %407 = vmatpush.msra.mxu0 0.0
      %408 = vmatpush.msra.mxu0 0.0
      %409 = vmatpush.msra.mxu0 0.0
      %410 = vmatpush.msra.mxu0 0.0
      %411 = vmatpush.msra.mxu0 0.0
      %412 = vmatpush.msra.mxu0 0.0
      %413 = vmatpush.msra.mxu0 0.0
      %414 = vmatpush.msra.mxu0 0.0
      %415 = vmatpush.msra.mxu0 0.0
      %416 = vmatpush.msra.mxu0 %v333
      %417 = vmatpush.msra.mxu0 %v331
      %418 = vmatpush.msra.mxu0 %v329
      %419 = vmatpush.msra.mxu0 %v327
      %420 = vmatmul.f32.gmra.mxu0 %v364
      %v421 = vpop.f32.mrf.mxu0
      %v422 = vadd.f32 %v345, %v421
      %423 = vmatmul.f32.gmra.mxu0 %v367
      %v424 = vpop.f32.mrf.mxu0
      %v425 = vadd.f32 %v350, %v424
      %426 = vmatmul.f32.gmra.mxu0 %v370
      %v427 = vpop.f32.mrf.mxu0
      %v428 = vadd.f32 %v355, %v427
      %429 = vmatmul.f32.gmra.mxu0 %v373
      %v430 = vpop.f32.mrf.mxu0
      %v431 = vadd.f32 %v360, %v430
      %432 = vdwg.mxu0
      %v433 = vmul.f32 %v393, 0.1
      %v434 = vmul.f32 %v422, 0.1
      %v435 = vmul.f32 %v396, 0.1
      %v436 = vmul.f32 %v425, 0.1
      %v437 = vmul.f32 %v399, 0.1
      %v438 = vmul.f32 %v428, 0.1
      %v439 = vmul.f32 %v402, 0.1
      %v440 = vmul.f32 %v431, 0.1
      %v441 = vmax.f32 %v393, %v433
      %v442 = vmax.f32 %v422, %v434
      %v443 = vmax.f32 %v396, %v435
      %v444 = vmax.f32 %v425, %v436
      %v445 = vmax.f32 %v399, %v437
      %v446 = vmax.f32 %v428, %v438
      %v447 = vmax.f32 %v402, %v439
      %v448 = vmax.f32 %v431, %v440
      %vm449 = vcmask 130048
      %v450 = vsel %vm449, %v442, 0.0
      %v451 = vadd.f32 %v441, %v450
      %452 = vadd.xlane.f32.xlu0 %v451
      %v453 = vpop.xlane.xlu0 %452
      %v454 = vsel %vm449, %v444, 0.0
      %v455 = vadd.f32 %v443, %v454
      %456 = vadd.xlane.f32.xlu0 %v455
      %v457 = vpop.xlane.xlu0 %456
      %v458 = vsel %vm449, %v446, 0.0
      %v459 = vadd.f32 %v445, %v458
      %460 = vadd.xlane.f32.xlu0 %v459
      %v461 = vpop.xlane.xlu0 %460
      %v462 = vsel %vm449, %v448, 0.0
      %v463 = vadd.f32 %v447, %v462
      %464 = vadd.xlane.f32.xlu0 %v463
      %v465 = vpop.xlane.xlu0 %464
      %v466 = vmul.f32 %v453, 0.0069444445
      %v467 = vmul.f32 %v457, 0.0069444445
      %v468 = vmul.f32 %v461, 0.0069444445
      %v469 = vmul.f32 %v465, 0.0069444445
      %v470 = vld [vmem:[%s4] sm:$0x3]
      %v472 = vsel %vm362, %v470, 0
      %474 = vmatpush.msra.mxu0 0.0
      %475 = vmatpush.msra.mxu0 0.0
      %476 = vmatpush.msra.mxu0 0.0
      %477 = vmatpush.msra.mxu0 0.0
      %478 = vmatpush.msra.mxu0 0.0
      %479 = vmatpush.msra.mxu0 0.0
      %480 = vmatpush.msra.mxu0 0.0
      %481 = vmatpush.msra.mxu0 0.0
      %482 = vmatpush.msra.mxu0 0.0
      %483 = vmatpush.msra.mxu0 0.0
      %484 = vmatpush.msra.mxu0 0.0
      %485 = vmatpush.msra.mxu0 0.0
      %486 = vmatpush.msra.mxu0 %v469
      %487 = vmatpush.msra.mxu0 %v468
      %488 = vmatpush.msra.mxu0 %v467
      %489 = vmatpush.msra.mxu0 %v466
      %490 = vmatmul.f32.gmra.mxu0 %v472
      %v491 = vpop.f32.mrf.mxu0
      %v492 = vadd.f32 0.0, %v491
      %493 = vdwg.mxu0
      %v494 = vmax.f32 %v492, 0.0
      %v495 = vld [vmem:[%s5] sm:$0xff]
      %v496 = vld [vmem:[%s5 + $0x8] sm:$0xff]
      %v497 = vld [vmem:[%s5 + $0x10] sm:$0xff]
      %v498 = vld [vmem:[%s5 + $0x18] sm:$0xff]
      %vm499 = vcmask 15360
      %v501 = vsel %vm499, %v495, 0
      %v504 = vsel %vm499, %v496, 0
      %v507 = vsel %vm499, %v497, 0
      %v510 = vsel %vm499, %v498, 0
      %vm512 = vcmask 1041408
      %v514 = vsel %vm512, %v494, 0
      %516 = vmatpush.msra.mxu0 0.0
      %517 = vmatpush.msra.mxu0 0.0
      %518 = vmatpush.msra.mxu0 0.0
      %519 = vmatpush.msra.mxu0 0.0
      %520 = vmatpush.msra.mxu0 0.0
      %521 = vmatpush.msra.mxu0 0.0
      %522 = vmatpush.msra.mxu0 0.0
      %523 = vmatpush.msra.mxu0 0.0
      %524 = vmatpush.msra.mxu0 0.0
      %525 = vmatpush.msra.mxu0 0.0
      %526 = vmatpush.msra.mxu0 0.0
      %527 = vmatpush.msra.mxu0 0.0
      %528 = vmatpush.msra.mxu0 0.0
      %529 = vmatpush.msra.mxu0 0.0
      %530 = vmatpush.msra.mxu0 0.0
      %531 = vmatpush.msra.mxu0 %v514
      %532 = vmatmul.f32.gmra.mxu0 %v501
      %v533 = vpop.f32.mrf.mxu0
      %v534 = vadd.f32 0.0, %v533
      %535 = vmatmul.f32.gmra.mxu0 %v504
      %v536 = vpop.f32.mrf.mxu0
      %v537 = vadd.f32 0.0, %v536
      %538 = vmatmul.f32.gmra.mxu0 %v507
      %v539 = vpop.f32.mrf.mxu0
      %v540 = vadd.f32 0.0, %v539
      %541 = vmatmul.f32.gmra.mxu0 %v510
      %v542 = vpop.f32.mrf.mxu0
      %v543 = vadd.f32 0.0, %v542
      %544 = vdwg.mxu0
      %v545 = vxor.u32 %v534, 2147483648
      %v546 = vxor.u32 %v537, 2147483648
      %v547 = vxor.u32 %v540, 2147483648
      %v548 = vxor.u32 %v543, 2147483648
      %v549 = vmul.f32 %v545, 1.442695
      %v550 = vpow.pop %v549
      %v551 = vmul.f32 %v546, 1.442695
      %v552 = vpow.pop %v551
      %v553 = vmul.f32 %v547, 1.442695
      %v554 = vpow.pop %v553
      %v555 = vmul.f32 %v548, 1.442695
      %v556 = vpow.pop %v555
      %v557 = vadd.f32 %v550, 1.0
      %v558 = vadd.f32 %v552, 1.0
      %v559 = vadd.f32 %v554, 1.0
      %v560 = vadd.f32 %v556, 1.0
      %v561 = vrcp.pop %v557
      %v562 = vmul.f32 %v557, %v561
      %v563 = vsub.f32 1.0, %v562
      %v564 = vmul.f32 %v561, %v563
      %v565 = vadd.f32 %v561, %v564
      %vm566 = vweird.f32 %v557
      %vm567 = vweird.f32 %v561
      %vm568 = vmor %vm566, %vm567
      %v569 = vsel %vm568, %v561, %v565
      %v570 = vand.u32 2147483647, %v557
      %vm571 = vcmp.eq.f32.partialorder %v570, 8.507059e+37
      %v572 = vand.u32 %v557, 2147483648
      %v573 = vor.u32 1.1754944e-38, %v572
      %v574 = vsel %vm571, %v573, %v569
      %v575 = vmul.f32 1.0, %v574
      %v576 = vrcp.pop %v558
      %v577 = vmul.f32 %v558, %v576
      %v578 = vsub.f32 1.0, %v577
      %v579 = vmul.f32 %v576, %v578
      %v580 = vadd.f32 %v576, %v579
      %vm581 = vweird.f32 %v558
      %vm582 = vweird.f32 %v576
      %vm583 = vmor %vm581, %vm582
      %v584 = vsel %vm583, %v576, %v580
      %v585 = vand.u32 2147483647, %v558
      %vm586 = vcmp.eq.f32.partialorder %v585, 8.507059e+37
      %v587 = vand.u32 %v558, 2147483648
      %v588 = vor.u32 1.1754944e-38, %v587
      %v589 = vsel %vm586, %v588, %v584
      %v590 = vmul.f32 1.0, %v589
      %v591 = vrcp.pop %v559
      %v592 = vmul.f32 %v559, %v591
      %v593 = vsub.f32 1.0, %v592
      %v594 = vmul.f32 %v591, %v593
      %v595 = vadd.f32 %v591, %v594
      %vm596 = vweird.f32 %v559
      %vm597 = vweird.f32 %v591
      %vm598 = vmor %vm596, %vm597
      %v599 = vsel %vm598, %v591, %v595
      %v600 = vand.u32 2147483647, %v559
      %vm601 = vcmp.eq.f32.partialorder %v600, 8.507059e+37
      %v602 = vand.u32 %v559, 2147483648
      %v603 = vor.u32 1.1754944e-38, %v602
      %v604 = vsel %vm601, %v603, %v599
      %v605 = vmul.f32 1.0, %v604
      %v606 = vrcp.pop %v560
      %v607 = vmul.f32 %v560, %v606
      %v608 = vsub.f32 1.0, %v607
      %v609 = vmul.f32 %v606, %v608
      %v610 = vadd.f32 %v606, %v609
      %vm611 = vweird.f32 %v560
      %vm612 = vweird.f32 %v606
      %vm613 = vmor %vm611, %vm612
      %v614 = vsel %vm613, %v606, %v610
      %v615 = vand.u32 2147483647, %v560
      %vm616 = vcmp.eq.f32.partialorder %v615, 8.507059e+37
      %v617 = vand.u32 %v560, 2147483648
      %v618 = vor.u32 1.1754944e-38, %v617
      %v619 = vsel %vm616, %v618, %v614
      %v620 = vmul.f32 1.0, %v619
      %622 = vset.pattern.permute.xlu0 0
      %623 = vperm.xlu0 %622, %v575
      %v624 = vpop.permute.xlu0 %623
      %627 = vset.pattern.permute.xlu0 0
      %628 = vperm.xlu0 %627, %v590
      %v629 = vpop.permute.xlu0 %628
      %632 = vset.pattern.permute.xlu0 0
      %633 = vperm.xlu0 %632, %v605
      %v634 = vpop.permute.xlu0 %633
      %637 = vset.pattern.permute.xlu0 0
      %638 = vperm.xlu0 %637, %v620
      %v639 = vpop.permute.xlu0 %638
      %v641 = vmul.f32 %v441, %v624
      %v642 = vmul.f32 %v442, %v624
      %v643 = vmul.f32 %v443, %v629
      %v644 = vmul.f32 %v444, %v629
      %v645 = vmul.f32 %v445, %v634
      %v646 = vmul.f32 %v446, %v634
      %v647 = vmul.f32 %v447, %v639
      %v648 = vmul.f32 %v448, %v639
      %v649 = vld [vmem:[%s6] sm:$0xff]
      %v650 = vld [vmem:[%s6 + $0x8] sm:$0xff]
      %v651 = vld [vmem:[%s6 + $0x10] sm:$0xff]
      %v652 = vld [vmem:[%s6 + $0x18] sm:$0xff]
      %v653 = vld [vmem:[%s7] sm:$0xff]
      %v654 = vld [vmem:[%s7 + $0x8] sm:$0xff]
      %v655 = vld [vmem:[%s7 + $0x10] sm:$0xff]
      %v656 = vld [vmem:[%s7 + $0x18] sm:$0xff]
      %658 = vset.pattern.permute.xlu0 0
      %659 = vperm.xlu0 %658, %v653
      %v660 = vpop.permute.xlu0 %659
      %663 = vset.pattern.permute.xlu0 0
      %664 = vperm.xlu0 %663, %v654
      %v665 = vpop.permute.xlu0 %664
      %668 = vset.pattern.permute.xlu0 0
      %669 = vperm.xlu0 %668, %v655
      %v670 = vpop.permute.xlu0 %669
      %673 = vset.pattern.permute.xlu0 0
      %674 = vperm.xlu0 %673, %v656
      %v675 = vpop.permute.xlu0 %674
      %v678 = vsel %vm362, %v649, 0
      %v681 = vsel %vm362, %v650, 0
      %v684 = vsel %vm362, %v651, 0
      %v687 = vsel %vm362, %v652, 0
      %689 = vmatpush.msra.mxu0 0.0
      %690 = vmatpush.msra.mxu0 0.0
      %691 = vmatpush.msra.mxu0 0.0
      %692 = vmatpush.msra.mxu0 0.0
      %693 = vmatpush.msra.mxu0 0.0
      %694 = vmatpush.msra.mxu0 0.0
      %695 = vmatpush.msra.mxu0 0.0
      %696 = vmatpush.msra.mxu0 0.0
      %697 = vmatpush.msra.mxu0 0.0
      %698 = vmatpush.msra.mxu0 0.0
      %699 = vmatpush.msra.mxu0 0.0
      %700 = vmatpush.msra.mxu0 0.0
      %701 = vmatpush.msra.mxu0 %v647
      %702 = vmatpush.msra.mxu0 %v645
      %703 = vmatpush.msra.mxu0 %v643
      %704 = vmatpush.msra.mxu0 %v641
      %705 = vmatmul.f32.gmra.mxu0 %v678
      %v706 = vpop.f32.mrf.mxu0
      %v707 = vadd.f32 %v660, %v706
      %708 = vmatmul.f32.gmra.mxu0 %v681
      %v709 = vpop.f32.mrf.mxu0
      %v710 = vadd.f32 %v665, %v709
      %711 = vmatmul.f32.gmra.mxu0 %v684
      %v712 = vpop.f32.mrf.mxu0
      %v713 = vadd.f32 %v670, %v712
      %714 = vmatmul.f32.gmra.mxu0 %v687
      %v715 = vpop.f32.mrf.mxu0
      %v716 = vadd.f32 %v675, %v715
      %717 = vdwg.mxu0
      %718 = vmatpush.msra.mxu0 0.0
      %719 = vmatpush.msra.mxu0 0.0
      %720 = vmatpush.msra.mxu0 0.0
      %721 = vmatpush.msra.mxu0 0.0
      %722 = vmatpush.msra.mxu0 0.0
      %723 = vmatpush.msra.mxu0 0.0
      %724 = vmatpush.msra.mxu0 0.0
      %725 = vmatpush.msra.mxu0 0.0
      %726 = vmatpush.msra.mxu0 0.0
      %727 = vmatpush.msra.mxu0 0.0
      %728 = vmatpush.msra.mxu0 0.0
      %729 = vmatpush.msra.mxu0 0.0
      %730 = vmatpush.msra.mxu0 %v648
      %731 = vmatpush.msra.mxu0 %v646
      %732 = vmatpush.msra.mxu0 %v644
      %733 = vmatpush.msra.mxu0 %v642
      %734 = vmatmul.f32.gmra.mxu0 %v678
      %v735 = vpop.f32.mrf.mxu0
      %v736 = vadd.f32 %v660, %v735
      %737 = vmatmul.f32.gmra.mxu0 %v681
      %v738 = vpop.f32.mrf.mxu0
      %v739 = vadd.f32 %v665, %v738
      %740 = vmatmul.f32.gmra.mxu0 %v684
      %v741 = vpop.f32.mrf.mxu0
      %v742 = vadd.f32 %v670, %v741
      %743 = vmatmul.f32.gmra.mxu0 %v687
      %v744 = vpop.f32.mrf.mxu0
      %v745 = vadd.f32 %v675, %v744
      %746 = vdwg.mxu0
      %v747 = vadd.f32 %v326, %v707
      %v748 = vadd.f32 %v327, %v736
      %v749 = vadd.f32 %v328, %v710
      %v750 = vadd.f32 %v329, %v739
      %v751 = vadd.f32 %v330, %v713
      %v752 = vadd.f32 %v331, %v742
      %v753 = vadd.f32 %v332, %v716
      %v754 = vadd.f32 %v333, %v745
      %v755 = vand.u32 2147483647, %v751
      %vm756 = vcmp.le.f32.partialorder %v755, 0.7853982
      %vm757 = vcmp.lt.s32.totalorder %v751, 0
      %v758 = vand.u32 %v751, 2139095040
      %v759 = vshrl.u32 %v758, 23
      %v760 = vsub.s32 %v759, 127
      %v761 = vand.u32 2147483647, %v751
      %v762 = vand.u32 %v761, 8388607
      %v763 = vor.u32 %v762, 8388608
      %v764 = vsub.s32 0, %v763
      %v765 = vadd.s32 %v760, 1
      %vm766 = vcmp.gt.s32.totalorder %v765, 0
      %v767 = vsel %vm766, %v765, 0
      %v768 = vshrl.u32 %v767, 5
      %v769 = vand.u32 %v767, 31
      %v770 = vsub.s32 32, %v769
      %v771 = vshrl.u32 683565275, %v770
      %v772 = vshll.u32 683565275, %v769
      %v773 = vshrl.u32 2475754826, %v770
      %v774 = vor.u32 %v772, %v773
      %v775 = vshll.u32 2475754826, %v769
      %v776 = vshrl.u32 2131351028, %v770
      %v777 = vor.u32 %v775, %v776
      %v778 = vshll.u32 2131351028, %v769
      %v779 = vshrl.u32 2102212464, %v770
      %v780 = vor.u32 %v778, %v779
      %v781 = vshll.u32 2102212464, %v769
      %v782 = vshrl.u32 920167782, %v770
      %v783 = vor.u32 %v781, %v782
      %v784 = vshll.u32 920167782, %v769
      %v785 = vshrl.u32 1326507024, %v770
      %v786 = vor.u32 %v784, %v785
      %vm787 = vcmp.lt.s32.totalorder %v768, 1
      %vm788 = vcmp.lt.s32.totalorder %v768, 2
      %vm789 = vcmp.lt.s32.totalorder %v768, 3
      %vm790 = vcmp.lt.s32.totalorder %v768, 4
      %v791 = vsel %vm787, %v771, %v774
      %v792 = vsel %vm790, %v780, 2102212464
      %v793 = vsel %vm789, %v777, %v792
      %v794 = vsel %vm788, %v791, %v793
      %v795 = vsel %vm787, %v774, %v777
      %v796 = vsel %vm790, %v783, 920167782
      %v797 = vsel %vm789, %v780, %v796
      %v798 = vsel %vm788, %v795, %v797
      %v799 = vsel %vm787, %v777, %v780
      %v800 = vsel %vm790, %v786, 1326507024
      %v801 = vsel %vm789, %v783, %v800
      %v802 = vsel %vm788, %v799, %v801
      %v803 = vshll.u32 %v763, 8
      %v804 = vand.u32 %v803, 65535
      %v805 = vshrl.u32 %v803, 16
      %v806 = vand.u32 %v802, 65535
      %v807 = vshrl.u32 %v802, 16
      %v808 = vmul.u32 %v804, %v806
      %v809 = vmul.u32 %v804, %v807
      %v810 = vmul.u32 %v805, %v806
      %v811 = vmul.u32 %v805, %v807
      %v812 = vshll.u32 %v809, 16
      %v813 = vshrl.u32 %v809, 16
      %v814 = vshll.u32 %v810, 16
      %v815 = vshrl.u32 %v810, 16
      %vm816 = vc.u32 %v808, %v812
      %v817 = vsel %vm816, 1, 0
      %v818 = vadd.s32 %v808, %v812
      %v819 = vadd.s32 %v811, %v817
      %vm820 = vc.u32 %v818, %v814
      %v821 = vsel %vm820, 1, 0
      %v822 = vadd.s32 %v818, %v814
      %v823 = vadd.s32 %v819, %v821
      %v824 = vadd.s32 %v823, %v813
      %v825 = vadd.s32 %v824, %v815
      %v826 = vand.u32 %v803, 65535
      %v827 = vshrl.u32 %v803, 16
      %v828 = vand.u32 %v798, 65535
      %v829 = vshrl.u32 %v798, 16
      %v830 = vmul.u32 %v826, %v828
      %v831 = vmul.u32 %v826, %v829
      %v832 = vmul.u32 %v827, %v828
      %v833 = vmul.u32 %v827, %v829
      %v834 = vshll.u32 %v831, 16
      %v835 = vshrl.u32 %v831, 16
      %v836 = vshll.u32 %v832, 16
      %v837 = vshrl.u32 %v832, 16
      %vm838 = vc.u32 %v830, %v834
      %v839 = vsel %vm838, 1, 0
      %v840 = vadd.s32 %v830, %v834
      %v841 = vadd.s32 %v833, %v839
      %vm842 = vc.u32 %v840, %v836
      %v843 = vsel %vm842, 1, 0
      %v844 = vadd.s32 %v840, %v836
      %v845 = vadd.s32 %v841, %v843
      %v846 = vadd.s32 %v845, %v835
      %v847 = vadd.s32 %v846, %v837
      %v848 = vmul.u32 %v803, %v794
      %v849 = vadd.s32 %v825, %v844
      %vm850 = vc.u32 %v825, %v844
      %v851 = vadd.s32 %v847, 1
      %v852 = vsel %vm850, %v851, %v847
      %v853 = vadd.s32 %v848, %v852
      %v854 = vadd.s32 %v853, 536870912
      %v855 = vshrl.u32 %v854, 30
      %v856 = vshll.u32 %v855, 30
      %v857 = vsub.s32 %v853, %v856
      %vm858 = vcmp.lt.s32.totalorder %v857, 0
      %v859 = vsub.s32 0, %v857
      %v860 = vsel %vm858, %v859, %v857
      %v861 = vclz %v860
      %v862 = vsub.s32 %v861, 2
      %vm863 = vcmp.gt.s32.totalorder 0, %v862
      %v864 = vsel %vm863, 0, %v862
      %v865 = vsub.s32 32, %v864
      %v866 = vshll.u32 %v857, %v864
      %v867 = vshrl.u32 %v849, %v865
      %v868 = vor.u32 %v866, %v867
      %v869 = vsub.s32 4294967266, %v864
      %v870 = vadd.s32 %v869, 127
      %v871 = vshll.u32 %v870, 23
      %v872 = vor.u32 4788187, %v871
      %v873 = vand.u32 2147483647, %v872
      %v875 = vcvt.s32.f32 %v868
      %v876 = vmul.f32 %v875, %v873
      %v877 = vxor.u32 %v876, 2147483648
      %v878 = vsel %vm757, %v877, %v876
      %v879 = vsub.s32 4, %v855
      %v880 = vsel %vm757, %v879, %v855
      %v881 = vsel %vm756, %v751, %v878
      %v882 = vsel %vm756, 0, %v880
      %v883 = vmul.f32 %v881, %v881
      %v884 = vmul.f32 %v883, -0.001358992
      %v885 = vadd.f32 %v884, 0.041655596
      %v886 = vmul.f32 %v883, %v885
      %v887 = vadd.f32 %v886, -0.4999988
      %v888 = vmul.f32 %v883, %v887
      %v889 = vadd.f32 1.0, %v888
      %v890 = vmul.f32 %v881, %v881
      %v891 = vmul.f32 %v890, -0.00019511016
      %v892 = vadd.f32 %v891, 0.008332121
      %v893 = vmul.f32 %v890, %v892
      %v894 = vadd.f32 %v893, -0.16666654
      %v895 = vmul.f32 %v890, %v894
      %v896 = vadd.f32 %v895, 1.0
      %v897 = vmul.f32 %v896, %v881
      %vm898 = vweird.f32 %v751
      %v899 = vand.u32 %v882, 3
      %vm900 = vcmp.lt.s32.totalorder %v899, 2
      %vm901 = vcmp.eq.s32.totalorder %v899, 0
      %v902 = vxor.u32 %v897, 2147483648
      %v903 = vsel %vm901, %v889, %v902
      %vm904 = vcmp.eq.s32.totalorder %v899, 2
      %v905 = vxor.u32 %v889, 2147483648
      %v906 = vsel %vm904, %v905, %v897
      %v907 = vsel %vm900, %v903, %v906
      %v908 = vsel %vm898, nan, %v907
      %v909 = vand.u32 2147483647, %v752
      %vm910 = vcmp.le.f32.partialorder %v909, 0.7853982
      %vm911 = vcmp.lt.s32.totalorder %v752, 0
      %v912 = vand.u32 %v752, 2139095040
      %v913 = vshrl.u32 %v912, 23
      %v914 = vsub.s32 %v913, 127
      %v915 = vand.u32 2147483647, %v752
      %v916 = vand.u32 %v915, 8388607
      %v917 = vor.u32 %v916, 8388608
      %v918 = vsub.s32 0, %v917
      %v919 = vadd.s32 %v914, 1
      %vm920 = vcmp.gt.s32.totalorder %v919, 0
      %v921 = vsel %vm920, %v919, 0
      %v922 = vshrl.u32 %v921, 5
      %v923 = vand.u32 %v921, 31
      %v924 = vsub.s32 32, %v923
      %v925 = vshrl.u32 683565275, %v924
      %v926 = vshll.u32 683565275, %v923
      %v927 = vshrl.u32 2475754826, %v924
      %v928 = vor.u32 %v926, %v927
      %v929 = vshll.u32 2475754826, %v923
      %v930 = vshrl.u32 2131351028, %v924
      %v931 = vor.u32 %v929, %v930
      %v932 = vshll.u32 2131351028, %v923
      %v933 = vshrl.u32 2102212464, %v924
      %v934 = vor.u32 %v932, %v933
      %v935 = vshll.u32 2102212464, %v923
      %v936 = vshrl.u32 920167782, %v924
      %v937 = vor.u32 %v935, %v936
      %v938 = vshll.u32 920167782, %v923
      %v939 = vshrl.u32 1326507024, %v924
      %v940 = vor.u32 %v938, %v939
      %vm941 = vcmp.lt.s32.totalorder %v922, 1
      %vm942 = vcmp.lt.s32.totalorder %v922, 2
      %vm943 = vcmp.lt.s32.totalorder %v922, 3
      %vm944 = vcmp.lt.s32.totalorder %v922, 4
      %v945 = vsel %vm941, %v925, %v928
      %v946 = vsel %vm944, %v934, 2102212464
      %v947 = vsel %vm943, %v931, %v946
      %v948 = vsel %vm942, %v945, %v947
      %v949 = vsel %vm941, %v928, %v931
      %v950 = vsel %vm944, %v937, 920167782
      %v951 = vsel %vm943, %v934, %v950
      %v952 = vsel %vm942, %v949, %v951
      %v953 = vsel %vm941, %v931, %v934
      %v954 = vsel %vm944, %v940, 1326507024
      %v955 = vsel %vm943, %v937, %v954
      %v956 = vsel %vm942, %v953, %v955
      %v957 = vshll.u32 %v917, 8
      %v958 = vand.u32 %v957, 65535
      %v959 = vshrl.u32 %v957, 16
      %v960 = vand.u32 %v956, 65535
      %v961 = vshrl.u32 %v956, 16
      %v962 = vmul.u32 %v958, %v960
      %v963 = vmul.u32 %v958, %v961
      %v964 = vmul.u32 %v959, %v960
      %v965 = vmul.u32 %v959, %v961
      %v966 = vshll.u32 %v963, 16
      %v967 = vshrl.u32 %v963, 16
      %v968 = vshll.u32 %v964, 16
      %v969 = vshrl.u32 %v964, 16
      %vm970 = vc.u32 %v962, %v966
      %v971 = vsel %vm970, 1, 0
      %v972 = vadd.s32 %v962, %v966
      %v973 = vadd.s32 %v965, %v971
      %vm974 = vc.u32 %v972, %v968
      %v975 = vsel %vm974, 1, 0
      %v976 = vadd.s32 %v972, %v968
      %v977 = vadd.s32 %v973, %v975
      %v978 = vadd.s32 %v977, %v967
      %v979 = vadd.s32 %v978, %v969
      %v980 = vand.u32 %v957, 65535
      %v981 = vshrl.u32 %v957, 16
      %v982 = vand.u32 %v952, 65535
      %v983 = vshrl.u32 %v952, 16
      %v984 = vmul.u32 %v980, %v982
      %v985 = vmul.u32 %v980, %v983
      %v986 = vmul.u32 %v981, %v982
      %v987 = vmul.u32 %v981, %v983
      %v988 = vshll.u32 %v985, 16
      %v989 = vshrl.u32 %v985, 16
      %v990 = vshll.u32 %v986, 16
      %v991 = vshrl.u32 %v986, 16
      %vm992 = vc.u32 %v984, %v988
      %v993 = vsel %vm992, 1, 0
      %v994 = vadd.s32 %v984, %v988
      %v995 = vadd.s32 %v987, %v993
      %vm996 = vc.u32 %v994, %v990
      %v997 = vsel %vm996, 1, 0
      %v998 = vadd.s32 %v994, %v990
      %v999 = vadd.s32 %v995, %v997
      %v1000 = vadd.s32 %v999, %v989
      %v1001 = vadd.s32 %v1000, %v991
      %v1002 = vmul.u32 %v957, %v948
      %v1003 = vadd.s32 %v979, %v998
      %vm1004 = vc.u32 %v979, %v998
      %v1005 = vadd.s32 %v1001, 1
      %v1006 = vsel %vm1004, %v1005, %v1001
      %v1007 = vadd.s32 %v1002, %v1006
      %v1008 = vadd.s32 %v1007, 536870912
      %v1009 = vshrl.u32 %v1008, 30
      %v1010 = vshll.u32 %v1009, 30
      %v1011 = vsub.s32 %v1007, %v1010
      %vm1012 = vcmp.lt.s32.totalorder %v1011, 0
      %v1013 = vsub.s32 0, %v1011
      %v1014 = vsel %vm1012, %v1013, %v1011
      %v1015 = vclz %v1014
      %v1016 = vsub.s32 %v1015, 2
      %vm1017 = vcmp.gt.s32.totalorder 0, %v1016
      %v1018 = vsel %vm1017, 0, %v1016
      %v1019 = vsub.s32 32, %v1018
      %v1020 = vshll.u32 %v1011, %v1018
      %v1021 = vshrl.u32 %v1003, %v1019
      %v1022 = vor.u32 %v1020, %v1021
      %v1023 = vsub.s32 4294967266, %v1018
      %v1024 = vadd.s32 %v1023, 127
      %v1025 = vshll.u32 %v1024, 23
      %v1026 = vor.u32 4788187, %v1025
      %v1027 = vand.u32 2147483647, %v1026
      %v1029 = vcvt.s32.f32 %v1022
      %v1030 = vmul.f32 %v1029, %v1027
      %v1031 = vxor.u32 %v1030, 2147483648
      %v1032 = vsel %vm911, %v1031, %v1030
      %v1033 = vsub.s32 4, %v1009
      %v1034 = vsel %vm911, %v1033, %v1009
      %v1035 = vsel %vm910, %v752, %v1032
      %v1036 = vsel %vm910, 0, %v1034
      %v1037 = vmul.f32 %v1035, %v1035
      %v1038 = vmul.f32 %v1037, -0.001358992
      %v1039 = vadd.f32 %v1038, 0.041655596
      %v1040 = vmul.f32 %v1037, %v1039
      %v1041 = vadd.f32 %v1040, -0.4999988
      %v1042 = vmul.f32 %v1037, %v1041
      %v1043 = vadd.f32 1.0, %v1042
      %v1044 = vmul.f32 %v1035, %v1035
      %v1045 = vmul.f32 %v1044, -0.00019511016
      %v1046 = vadd.f32 %v1045, 0.008332121
      %v1047 = vmul.f32 %v1044, %v1046
      %v1048 = vadd.f32 %v1047, -0.16666654
      %v1049 = vmul.f32 %v1044, %v1048
      %v1050 = vadd.f32 %v1049, 1.0
      %v1051 = vmul.f32 %v1050, %v1035
      %vm1052 = vweird.f32 %v752
      %v1053 = vand.u32 %v1036, 3
      %vm1054 = vcmp.lt.s32.totalorder %v1053, 2
      %vm1055 = vcmp.eq.s32.totalorder %v1053, 0
      %v1056 = vxor.u32 %v1051, 2147483648
      %v1057 = vsel %vm1055, %v1043, %v1056
      %vm1058 = vcmp.eq.s32.totalorder %v1053, 2
      %v1059 = vxor.u32 %v1043, 2147483648
      %v1060 = vsel %vm1058, %v1059, %v1051
      %v1061 = vsel %vm1054, %v1057, %v1060
      %v1062 = vsel %vm1052, nan, %v1061
      %v1063 = vand.u32 2147483647, %v753
      %vm1064 = vcmp.le.f32.partialorder %v1063, 0.7853982
      %vm1065 = vcmp.lt.s32.totalorder %v753, 0
      %v1066 = vand.u32 %v753, 2139095040
      %v1067 = vshrl.u32 %v1066, 23
      %v1068 = vsub.s32 %v1067, 127
      %v1069 = vand.u32 2147483647, %v753
      %v1070 = vand.u32 %v1069, 8388607
      %v1071 = vor.u32 %v1070, 8388608
      %v1072 = vsub.s32 0, %v1071
      %v1073 = vadd.s32 %v1068, 1
      %vm1074 = vcmp.gt.s32.totalorder %v1073, 0
      %v1075 = vsel %vm1074, %v1073, 0
      %v1076 = vshrl.u32 %v1075, 5
      %v1077 = vand.u32 %v1075, 31
      %v1078 = vsub.s32 32, %v1077
      %v1079 = vshrl.u32 683565275, %v1078
      %v1080 = vshll.u32 683565275, %v1077
      %v1081 = vshrl.u32 2475754826, %v1078
      %v1082 = vor.u32 %v1080, %v1081
      %v1083 = vshll.u32 2475754826, %v1077
      %v1084 = vshrl.u32 2131351028, %v1078
      %v1085 = vor.u32 %v1083, %v1084
      %v1086 = vshll.u32 2131351028, %v1077
      %v1087 = vshrl.u32 2102212464, %v1078
      %v1088 = vor.u32 %v1086, %v1087
      %v1089 = vshll.u32 2102212464, %v1077
      %v1090 = vshrl.u32 920167782, %v1078
      %v1091 = vor.u32 %v1089, %v1090
      %v1092 = vshll.u32 920167782, %v1077
      %v1093 = vshrl.u32 1326507024, %v1078
      %v1094 = vor.u32 %v1092, %v1093
      %vm1095 = vcmp.lt.s32.totalorder %v1076, 1
      %vm1096 = vcmp.lt.s32.totalorder %v1076, 2
      %vm1097 = vcmp.lt.s32.totalorder %v1076, 3
      %vm1098 = vcmp.lt.s32.totalorder %v1076, 4
      %v1099 = vsel %vm1095, %v1079, %v1082
      %v1100 = vsel %vm1098, %v1088, 2102212464
      %v1101 = vsel %vm1097, %v1085, %v1100
      %v1102 = vsel %vm1096, %v1099, %v1101
      %v1103 = vsel %vm1095, %v1082, %v1085
      %v1104 = vsel %vm1098, %v1091, 920167782
      %v1105 = vsel %vm1097, %v1088, %v1104
      %v1106 = vsel %vm1096, %v1103, %v1105
      %v1107 = vsel %vm1095, %v1085, %v1088
      %v1108 = vsel %vm1098, %v1094, 1326507024
      %v1109 = vsel %vm1097, %v1091, %v1108
      %v1110 = vsel %vm1096, %v1107, %v1109
      %v1111 = vshll.u32 %v1071, 8
      %v1112 = vand.u32 %v1111, 65535
      %v1113 = vshrl.u32 %v1111, 16
      %v1114 = vand.u32 %v1110, 65535
      %v1115 = vshrl.u32 %v1110, 16
      %v1116 = vmul.u32 %v1112, %v1114
      %v1117 = vmul.u32 %v1112, %v1115
      %v1118 = vmul.u32 %v1113, %v1114
      %v1119 = vmul.u32 %v1113, %v1115
      %v1120 = vshll.u32 %v1117, 16
      %v1121 = vshrl.u32 %v1117, 16
      %v1122 = vshll.u32 %v1118, 16
      %v1123 = vshrl.u32 %v1118, 16
      %vm1124 = vc.u32 %v1116, %v1120
      %v1125 = vsel %vm1124, 1, 0
      %v1126 = vadd.s32 %v1116, %v1120
      %v1127 = vadd.s32 %v1119, %v1125
      %vm1128 = vc.u32 %v1126, %v1122
      %v1129 = vsel %vm1128, 1, 0
      %v1130 = vadd.s32 %v1126, %v1122
      %v1131 = vadd.s32 %v1127, %v1129
      %v1132 = vadd.s32 %v1131, %v1121
      %v1133 = vadd.s32 %v1132, %v1123
      %v1134 = vand.u32 %v1111, 65535
      %v1135 = vshrl.u32 %v1111, 16
      %v1136 = vand.u32 %v1106, 65535
      %v1137 = vshrl.u32 %v1106, 16
      %v1138 = vmul.u32 %v1134, %v1136
      %v1139 = vmul.u32 %v1134, %v1137
      %v1140 = vmul.u32 %v1135, %v1136
      %v1141 = vmul.u32 %v1135, %v1137
      %v1142 = vshll.u32 %v1139, 16
      %v1143 = vshrl.u32 %v1139, 16
      %v1144 = vshll.u32 %v1140, 16
      %v1145 = vshrl.u32 %v1140, 16
      %vm1146 = vc.u32 %v1138, %v1142
      %v1147 = vsel %vm1146, 1, 0
      %v1148 = vadd.s32 %v1138, %v1142
      %v1149 = vadd.s32 %v1141, %v1147
      %vm1150 = vc.u32 %v1148, %v1144
      %v1151 = vsel %vm1150, 1, 0
      %v1152 = vadd.s32 %v1148, %v1144
      %v1153 = vadd.s32 %v1149, %v1151
      %v1154 = vadd.s32 %v1153, %v1143
      %v1155 = vadd.s32 %v1154, %v1145
      %v1156 = vmul.u32 %v1111, %v1102
      %v1157 = vadd.s32 %v1133, %v1152
      %vm1158 = vc.u32 %v1133, %v1152
      %v1159 = vadd.s32 %v1155, 1
      %v1160 = vsel %vm1158, %v1159, %v1155
      %v1161 = vadd.s32 %v1156, %v1160
      %v1162 = vadd.s32 %v1161, 536870912
      %v1163 = vshrl.u32 %v1162, 30
      %v1164 = vshll.u32 %v1163, 30
      %v1165 = vsub.s32 %v1161, %v1164
      %vm1166 = vcmp.lt.s32.totalorder %v1165, 0
      %v1167 = vsub.s32 0, %v1165
      %v1168 = vsel %vm1166, %v1167, %v1165
      %v1169 = vclz %v1168
      %v1170 = vsub.s32 %v1169, 2
      %vm1171 = vcmp.gt.s32.totalorder 0, %v1170
      %v1172 = vsel %vm1171, 0, %v1170
      %v1173 = vsub.s32 32, %v1172
      %v1174 = vshll.u32 %v1165, %v1172
      %v1175 = vshrl.u32 %v1157, %v1173
      %v1176 = vor.u32 %v1174, %v1175
      %v1177 = vsub.s32 4294967266, %v1172
      %v1178 = vadd.s32 %v1177, 127
      %v1179 = vshll.u32 %v1178, 23
      %v1180 = vor.u32 4788187, %v1179
      %v1181 = vand.u32 2147483647, %v1180
      %v1183 = vcvt.s32.f32 %v1176
      %v1184 = vmul.f32 %v1183, %v1181
      %v1185 = vxor.u32 %v1184, 2147483648
      %v1186 = vsel %vm1065, %v1185, %v1184
      %v1187 = vsub.s32 4, %v1163
      %v1188 = vsel %vm1065, %v1187, %v1163
      %v1189 = vsel %vm1064, %v753, %v1186
      %v1190 = vsel %vm1064, 0, %v1188
      %v1191 = vmul.f32 %v1189, %v1189
      %v1192 = vmul.f32 %v1191, -0.001358992
      %v1193 = vadd.f32 %v1192, 0.041655596
      %v1194 = vmul.f32 %v1191, %v1193
      %v1195 = vadd.f32 %v1194, -0.4999988
      %v1196 = vmul.f32 %v1191, %v1195
      %v1197 = vadd.f32 1.0, %v1196
      %v1198 = vmul.f32 %v1189, %v1189
      %v1199 = vmul.f32 %v1198, -0.00019511016
      %v1200 = vadd.f32 %v1199, 0.008332121
      %v1201 = vmul.f32 %v1198, %v1200
      %v1202 = vadd.f32 %v1201, -0.16666654
      %v1203 = vmul.f32 %v1198, %v1202
      %v1204 = vadd.f32 %v1203, 1.0
      %v1205 = vmul.f32 %v1204, %v1189
      %vm1206 = vweird.f32 %v753
      %v1207 = vand.u32 %v1190, 3
      %vm1208 = vcmp.lt.s32.totalorder %v1207, 2
      %vm1209 = vcmp.eq.s32.totalorder %v1207, 0
      %v1210 = vxor.u32 %v1205, 2147483648
      %v1211 = vsel %vm1209, %v1197, %v1210
      %vm1212 = vcmp.eq.s32.totalorder %v1207, 2
      %v1213 = vxor.u32 %v1197, 2147483648
      %v1214 = vsel %vm1212, %v1213, %v1205
      %v1215 = vsel %vm1208, %v1211, %v1214
      %v1216 = vsel %vm1206, nan, %v1215
      %v1217 = vand.u32 2147483647, %v754
      %vm1218 = vcmp.le.f32.partialorder %v1217, 0.7853982
      %vm1219 = vcmp.lt.s32.totalorder %v754, 0
      %v1220 = vand.u32 %v754, 2139095040
      %v1221 = vshrl.u32 %v1220, 23
      %v1222 = vsub.s32 %v1221, 127
      %v1223 = vand.u32 2147483647, %v754
      %v1224 = vand.u32 %v1223, 8388607
      %v1225 = vor.u32 %v1224, 8388608
      %v1226 = vsub.s32 0, %v1225
      %v1227 = vadd.s32 %v1222, 1
      %vm1228 = vcmp.gt.s32.totalorder %v1227, 0
      %v1229 = vsel %vm1228, %v1227, 0
      %v1230 = vshrl.u32 %v1229, 5
      %v1231 = vand.u32 %v1229, 31
      %v1232 = vsub.s32 32, %v1231
      %v1233 = vshrl.u32 683565275, %v1232
      %v1234 = vshll.u32 683565275, %v1231
      %v1235 = vshrl.u32 2475754826, %v1232
      %v1236 = vor.u32 %v1234, %v1235
      %v1237 = vshll.u32 2475754826, %v1231
      %v1238 = vshrl.u32 2131351028, %v1232
      %v1239 = vor.u32 %v1237, %v1238
      %v1240 = vshll.u32 2131351028, %v1231
      %v1241 = vshrl.u32 2102212464, %v1232
      %v1242 = vor.u32 %v1240, %v1241
      %v1243 = vshll.u32 2102212464, %v1231
      %v1244 = vshrl.u32 920167782, %v1232
      %v1245 = vor.u32 %v1243, %v1244
      %v1246 = vshll.u32 920167782, %v1231
      %v1247 = vshrl.u32 1326507024, %v1232
      %v1248 = vor.u32 %v1246, %v1247
      %vm1249 = vcmp.lt.s32.totalorder %v1230, 1
      %vm1250 = vcmp.lt.s32.totalorder %v1230, 2
      %vm1251 = vcmp.lt.s32.totalorder %v1230, 3
      %vm1252 = vcmp.lt.s32.totalorder %v1230, 4
      %v1253 = vsel %vm1249, %v1233, %v1236
      %v1254 = vsel %vm1252, %v1242, 2102212464
      %v1255 = vsel %vm1251, %v1239, %v1254
      %v1256 = vsel %vm1250, %v1253, %v1255
      %v1257 = vsel %vm1249, %v1236, %v1239
      %v1258 = vsel %vm1252, %v1245, 920167782
      %v1259 = vsel %vm1251, %v1242, %v1258
      %v1260 = vsel %vm1250, %v1257, %v1259
      %v1261 = vsel %vm1249, %v1239, %v1242
      %v1262 = vsel %vm1252, %v1248, 1326507024
      %v1263 = vsel %vm1251, %v1245, %v1262
      %v1264 = vsel %vm1250, %v1261, %v1263
      %v1265 = vshll.u32 %v1225, 8
      %v1266 = vand.u32 %v1265, 65535
      %v1267 = vshrl.u32 %v1265, 16
      %v1268 = vand.u32 %v1264, 65535
      %v1269 = vshrl.u32 %v1264, 16
      %v1270 = vmul.u32 %v1266, %v1268
      %v1271 = vmul.u32 %v1266, %v1269
      %v1272 = vmul.u32 %v1267, %v1268
      %v1273 = vmul.u32 %v1267, %v1269
      %v1274 = vshll.u32 %v1271, 16
      %v1275 = vshrl.u32 %v1271, 16
      %v1276 = vshll.u32 %v1272, 16
      %v1277 = vshrl.u32 %v1272, 16
      %vm1278 = vc.u32 %v1270, %v1274
      %v1279 = vsel %vm1278, 1, 0
      %v1280 = vadd.s32 %v1270, %v1274
      %v1281 = vadd.s32 %v1273, %v1279
      %vm1282 = vc.u32 %v1280, %v1276
      %v1283 = vsel %vm1282, 1, 0
      %v1284 = vadd.s32 %v1280, %v1276
      %v1285 = vadd.s32 %v1281, %v1283
      %v1286 = vadd.s32 %v1285, %v1275
      %v1287 = vadd.s32 %v1286, %v1277
      %v1288 = vand.u32 %v1265, 65535
      %v1289 = vshrl.u32 %v1265, 16
      %v1290 = vand.u32 %v1260, 65535
      %v1291 = vshrl.u32 %v1260, 16
      %v1292 = vmul.u32 %v1288, %v1290
      %v1293 = vmul.u32 %v1288, %v1291
      %v1294 = vmul.u32 %v1289, %v1290
      %v1295 = vmul.u32 %v1289, %v1291
      %v1296 = vshll.u32 %v1293, 16
      %v1297 = vshrl.u32 %v1293, 16
      %v1298 = vshll.u32 %v1294, 16
      %v1299 = vshrl.u32 %v1294, 16
      %vm1300 = vc.u32 %v1292, %v1296
      %v1301 = vsel %vm1300, 1, 0
      %v1302 = vadd.s32 %v1292, %v1296
      %v1303 = vadd.s32 %v1295, %v1301
      %vm1304 = vc.u32 %v1302, %v1298
      %v1305 = vsel %vm1304, 1, 0
      %v1306 = vadd.s32 %v1302, %v1298
      %v1307 = vadd.s32 %v1303, %v1305
      %v1308 = vadd.s32 %v1307, %v1297
      %v1309 = vadd.s32 %v1308, %v1299
      %v1310 = vmul.u32 %v1265, %v1256
      %v1311 = vadd.s32 %v1287, %v1306
      %vm1312 = vc.u32 %v1287, %v1306
      %v1313 = vadd.s32 %v1309, 1
      %v1314 = vsel %vm1312, %v1313, %v1309
      %v1315 = vadd.s32 %v1310, %v1314
      %v1316 = vadd.s32 %v1315, 536870912
      %v1317 = vshrl.u32 %v1316, 30
      %v1318 = vshll.u32 %v1317, 30
      %v1319 = vsub.s32 %v1315, %v1318
      %vm1320 = vcmp.lt.s32.totalorder %v1319, 0
      %v1321 = vsub.s32 0, %v1319
      %v1322 = vsel %vm1320, %v1321, %v1319
      %v1323 = vclz %v1322
      %v1324 = vsub.s32 %v1323, 2
      %vm1325 = vcmp.gt.s32.totalorder 0, %v1324
      %v1326 = vsel %vm1325, 0, %v1324
      %v1327 = vsub.s32 32, %v1326
      %v1328 = vshll.u32 %v1319, %v1326
      %v1329 = vshrl.u32 %v1311, %v1327
      %v1330 = vor.u32 %v1328, %v1329
      %v1331 = vsub.s32 4294967266, %v1326
      %v1332 = vadd.s32 %v1331, 127
      %v1333 = vshll.u32 %v1332, 23
      %v1334 = vor.u32 4788187, %v1333
      %v1335 = vand.u32 2147483647, %v1334
      %v1337 = vcvt.s32.f32 %v1330
      %v1338 = vmul.f32 %v1337, %v1335
      %v1339 = vxor.u32 %v1338, 2147483648
      %v1340 = vsel %vm1219, %v1339, %v1338
      %v1341 = vsub.s32 4, %v1317
      %v1342 = vsel %vm1219, %v1341, %v1317
      %v1343 = vsel %vm1218, %v754, %v1340
      %v1344 = vsel %vm1218, 0, %v1342
      %v1345 = vmul.f32 %v1343, %v1343
      %v1346 = vmul.f32 %v1345, -0.001358992
      %v1347 = vadd.f32 %v1346, 0.041655596
      %v1348 = vmul.f32 %v1345, %v1347
      %v1349 = vadd.f32 %v1348, -0.4999988
      %v1350 = vmul.f32 %v1345, %v1349
      %v1351 = vadd.f32 1.0, %v1350
      %v1352 = vmul.f32 %v1343, %v1343
      %v1353 = vmul.f32 %v1352, -0.00019511016
      %v1354 = vadd.f32 %v1353, 0.008332121
      %v1355 = vmul.f32 %v1352, %v1354
      %v1356 = vadd.f32 %v1355, -0.16666654
      %v1357 = vmul.f32 %v1352, %v1356
      %v1358 = vadd.f32 %v1357, 1.0
      %v1359 = vmul.f32 %v1358, %v1343
      %vm1360 = vweird.f32 %v754
      %v1361 = vand.u32 %v1344, 3
      %vm1362 = vcmp.lt.s32.totalorder %v1361, 2
      %vm1363 = vcmp.eq.s32.totalorder %v1361, 0
      %v1364 = vxor.u32 %v1359, 2147483648
      %v1365 = vsel %vm1363, %v1351, %v1364
      %vm1366 = vcmp.eq.s32.totalorder %v1361, 2
      %v1367 = vxor.u32 %v1351, 2147483648
      %v1368 = vsel %vm1366, %v1367, %v1359
      %v1369 = vsel %vm1362, %v1365, %v1368
      %v1370 = vsel %vm1360, nan, %v1369
      %v1371 = vmul.f32 %v747, %v908
      %v1372 = vmul.f32 %v748, %v1062
      %v1373 = vmul.f32 %v749, %v1216
      %v1374 = vmul.f32 %v750, %v1370
      %v1375 = vand.u32 2147483647, %v751
      %vm1376 = vcmp.le.f32.partialorder %v1375, 0.7853982
      %vm1377 = vcmp.lt.s32.totalorder %v751, 0
      %v1378 = vand.u32 %v751, 2139095040
      %v1379 = vshrl.u32 %v1378, 23
      %v1380 = vsub.s32 %v1379, 127
      %v1381 = vand.u32 2147483647, %v751
      %v1382 = vand.u32 %v1381, 8388607
      %v1383 = vor.u32 %v1382, 8388608
      %v1384 = vsub.s32 0, %v1383
      %v1385 = vadd.s32 %v1380, 1
      %vm1386 = vcmp.gt.s32.totalorder %v1385, 0
      %v1387 = vsel %vm1386, %v1385, 0
      %v1388 = vshrl.u32 %v1387, 5
      %v1389 = vand.u32 %v1387, 31
      %v1390 = vsub.s32 32, %v1389
      %v1391 = vshrl.u32 683565275, %v1390
      %v1392 = vshll.u32 683565275, %v1389
      %v1393 = vshrl.u32 2475754826, %v1390
      %v1394 = vor.u32 %v1392, %v1393
      %v1395 = vshll.u32 2475754826, %v1389
      %v1396 = vshrl.u32 2131351028, %v1390
      %v1397 = vor.u32 %v1395, %v1396
      %v1398 = vshll.u32 2131351028, %v1389
      %v1399 = vshrl.u32 2102212464, %v1390
      %v1400 = vor.u32 %v1398, %v1399
      %v1401 = vshll.u32 2102212464, %v1389
      %v1402 = vshrl.u32 920167782, %v1390
      %v1403 = vor.u32 %v1401, %v1402
      %v1404 = vshll.u32 920167782, %v1389
      %v1405 = vshrl.u32 1326507024, %v1390
      %v1406 = vor.u32 %v1404, %v1405
      %vm1407 = vcmp.lt.s32.totalorder %v1388, 1
      %vm1408 = vcmp.lt.s32.totalorder %v1388, 2
      %vm1409 = vcmp.lt.s32.totalorder %v1388, 3
      %vm1410 = vcmp.lt.s32.totalorder %v1388, 4
      %v1411 = vsel %vm1407, %v1391, %v1394
      %v1412 = vsel %vm1410, %v1400, 2102212464
      %v1413 = vsel %vm1409, %v1397, %v1412
      %v1414 = vsel %vm1408, %v1411, %v1413
      %v1415 = vsel %vm1407, %v1394, %v1397
      %v1416 = vsel %vm1410, %v1403, 920167782
      %v1417 = vsel %vm1409, %v1400, %v1416
      %v1418 = vsel %vm1408, %v1415, %v1417
      %v1419 = vsel %vm1407, %v1397, %v1400
      %v1420 = vsel %vm1410, %v1406, 1326507024
      %v1421 = vsel %vm1409, %v1403, %v1420
      %v1422 = vsel %vm1408, %v1419, %v1421
      %v1423 = vshll.u32 %v1383, 8
      %v1424 = vand.u32 %v1423, 65535
      %v1425 = vshrl.u32 %v1423, 16
      %v1426 = vand.u32 %v1422, 65535
      %v1427 = vshrl.u32 %v1422, 16
      %v1428 = vmul.u32 %v1424, %v1426
      %v1429 = vmul.u32 %v1424, %v1427
      %v1430 = vmul.u32 %v1425, %v1426
      %v1431 = vmul.u32 %v1425, %v1427
      %v1432 = vshll.u32 %v1429, 16
      %v1433 = vshrl.u32 %v1429, 16
      %v1434 = vshll.u32 %v1430, 16
      %v1435 = vshrl.u32 %v1430, 16
      %vm1436 = vc.u32 %v1428, %v1432
      %v1437 = vsel %vm1436, 1, 0
      %v1438 = vadd.s32 %v1428, %v1432
      %v1439 = vadd.s32 %v1431, %v1437
      %vm1440 = vc.u32 %v1438, %v1434
      %v1441 = vsel %vm1440, 1, 0
      %v1442 = vadd.s32 %v1438, %v1434
      %v1443 = vadd.s32 %v1439, %v1441
      %v1444 = vadd.s32 %v1443, %v1433
      %v1445 = vadd.s32 %v1444, %v1435
      %v1446 = vand.u32 %v1423, 65535
      %v1447 = vshrl.u32 %v1423, 16
      %v1448 = vand.u32 %v1418, 65535
      %v1449 = vshrl.u32 %v1418, 16
      %v1450 = vmul.u32 %v1446, %v1448
      %v1451 = vmul.u32 %v1446, %v1449
      %v1452 = vmul.u32 %v1447, %v1448
      %v1453 = vmul.u32 %v1447, %v1449
      %v1454 = vshll.u32 %v1451, 16
      %v1455 = vshrl.u32 %v1451, 16
      %v1456 = vshll.u32 %v1452, 16
      %v1457 = vshrl.u32 %v1452, 16
      %vm1458 = vc.u32 %v1450, %v1454
      %v1459 = vsel %vm1458, 1, 0
      %v1460 = vadd.s32 %v1450, %v1454
      %v1461 = vadd.s32 %v1453, %v1459
      %vm1462 = vc.u32 %v1460, %v1456
      %v1463 = vsel %vm1462, 1, 0
      %v1464 = vadd.s32 %v1460, %v1456
      %v1465 = vadd.s32 %v1461, %v1463
      %v1466 = vadd.s32 %v1465, %v1455
      %v1467 = vadd.s32 %v1466, %v1457
      %v1468 = vmul.u32 %v1423, %v1414
      %v1469 = vadd.s32 %v1445, %v1464
      %vm1470 = vc.u32 %v1445, %v1464
      %v1471 = vadd.s32 %v1467, 1
      %v1472 = vsel %vm1470, %v1471, %v1467
      %v1473 = vadd.s32 %v1468, %v1472
      %v1474 = vadd.s32 %v1473, 536870912
      %v1475 = vshrl.u32 %v1474, 30
      %v1476 = vshll.u32 %v1475, 30
      %v1477 = vsub.s32 %v1473, %v1476
      %vm1478 = vcmp.lt.s32.totalorder %v1477, 0
      %v1479 = vsub.s32 0, %v1477
      %v1480 = vsel %vm1478, %v1479, %v1477
      %v1481 = vclz %v1480
      %v1482 = vsub.s32 %v1481, 2
      %vm1483 = vcmp.gt.s32.totalorder 0, %v1482
      %v1484 = vsel %vm1483, 0, %v1482
      %v1485 = vsub.s32 32, %v1484
      %v1486 = vshll.u32 %v1477, %v1484
      %v1487 = vshrl.u32 %v1469, %v1485
      %v1488 = vor.u32 %v1486, %v1487
      %v1489 = vsub.s32 4294967266, %v1484
      %v1490 = vadd.s32 %v1489, 127
      %v1491 = vshll.u32 %v1490, 23
      %v1492 = vor.u32 4788187, %v1491
      %v1493 = vand.u32 2147483647, %v1492
      %v1495 = vcvt.s32.f32 %v1488
      %v1496 = vmul.f32 %v1495, %v1493
      %v1497 = vxor.u32 %v1496, 2147483648
      %v1498 = vsel %vm1377, %v1497, %v1496
      %v1499 = vsub.s32 4, %v1475
      %v1500 = vsel %vm1377, %v1499, %v1475
      %v1501 = vsel %vm1376, %v751, %v1498
      %v1502 = vsel %vm1376, 0, %v1500
      %v1503 = vmul.f32 %v1501, %v1501
      %v1504 = vmul.f32 %v1503, -0.001358992
      %v1505 = vadd.f32 %v1504, 0.041655596
      %v1506 = vmul.f32 %v1503, %v1505
      %v1507 = vadd.f32 %v1506, -0.4999988
      %v1508 = vmul.f32 %v1503, %v1507
      %v1509 = vadd.f32 1.0, %v1508
      %v1510 = vmul.f32 %v1501, %v1501
      %v1511 = vmul.f32 %v1510, -0.00019511016
      %v1512 = vadd.f32 %v1511, 0.008332121
      %v1513 = vmul.f32 %v1510, %v1512
      %v1514 = vadd.f32 %v1513, -0.16666654
      %v1515 = vmul.f32 %v1510, %v1514
      %v1516 = vadd.f32 %v1515, 1.0
      %v1517 = vmul.f32 %v1516, %v1501
      %vm1518 = vweird.f32 %v751
      %v1519 = vadd.s32 %v1502, 3
      %v1520 = vand.u32 %v1519, 3
      %vm1521 = vcmp.lt.s32.totalorder %v1520, 2
      %vm1522 = vcmp.eq.s32.totalorder %v1520, 0
      %v1523 = vxor.u32 %v1517, 2147483648
      %v1524 = vsel %vm1522, %v1509, %v1523
      %vm1525 = vcmp.eq.s32.totalorder %v1520, 2
      %v1526 = vxor.u32 %v1509, 2147483648
      %v1527 = vsel %vm1525, %v1526, %v1517
      %v1528 = vsel %vm1521, %v1524, %v1527
      %v1529 = vsel %vm1518, nan, %v1528
      %v1530 = vand.u32 2147483647, %v752
      %vm1531 = vcmp.le.f32.partialorder %v1530, 0.7853982
      %vm1532 = vcmp.lt.s32.totalorder %v752, 0
      %v1533 = vand.u32 %v752, 2139095040
      %v1534 = vshrl.u32 %v1533, 23
      %v1535 = vsub.s32 %v1534, 127
      %v1536 = vand.u32 2147483647, %v752
      %v1537 = vand.u32 %v1536, 8388607
      %v1538 = vor.u32 %v1537, 8388608
      %v1539 = vsub.s32 0, %v1538
      %v1540 = vadd.s32 %v1535, 1
      %vm1541 = vcmp.gt.s32.totalorder %v1540, 0
      %v1542 = vsel %vm1541, %v1540, 0
      %v1543 = vshrl.u32 %v1542, 5
      %v1544 = vand.u32 %v1542, 31
      %v1545 = vsub.s32 32, %v1544
      %v1546 = vshrl.u32 683565275, %v1545
      %v1547 = vshll.u32 683565275, %v1544
      %v1548 = vshrl.u32 2475754826, %v1545
      %v1549 = vor.u32 %v1547, %v1548
      %v1550 = vshll.u32 2475754826, %v1544
      %v1551 = vshrl.u32 2131351028, %v1545
      %v1552 = vor.u32 %v1550, %v1551
      %v1553 = vshll.u32 2131351028, %v1544
      %v1554 = vshrl.u32 2102212464, %v1545
      %v1555 = vor.u32 %v1553, %v1554
      %v1556 = vshll.u32 2102212464, %v1544
      %v1557 = vshrl.u32 920167782, %v1545
      %v1558 = vor.u32 %v1556, %v1557
      %v1559 = vshll.u32 920167782, %v1544
      %v1560 = vshrl.u32 1326507024, %v1545
      %v1561 = vor.u32 %v1559, %v1560
      %vm1562 = vcmp.lt.s32.totalorder %v1543, 1
      %vm1563 = vcmp.lt.s32.totalorder %v1543, 2
      %vm1564 = vcmp.lt.s32.totalorder %v1543, 3
      %vm1565 = vcmp.lt.s32.totalorder %v1543, 4
      %v1566 = vsel %vm1562, %v1546, %v1549
      %v1567 = vsel %vm1565, %v1555, 2102212464
      %v1568 = vsel %vm1564, %v1552, %v1567
      %v1569 = vsel %vm1563, %v1566, %v1568
      %v1570 = vsel %vm1562, %v1549, %v1552
      %v1571 = vsel %vm1565, %v1558, 920167782
      %v1572 = vsel %vm1564, %v1555, %v1571
      %v1573 = vsel %vm1563, %v1570, %v1572
      %v1574 = vsel %vm1562, %v1552, %v1555
      %v1575 = vsel %vm1565, %v1561, 1326507024
      %v1576 = vsel %vm1564, %v1558, %v1575
      %v1577 = vsel %vm1563, %v1574, %v1576
      %v1578 = vshll.u32 %v1538, 8
      %v1579 = vand.u32 %v1578, 65535
      %v1580 = vshrl.u32 %v1578, 16
      %v1581 = vand.u32 %v1577, 65535
      %v1582 = vshrl.u32 %v1577, 16
      %v1583 = vmul.u32 %v1579, %v1581
      %v1584 = vmul.u32 %v1579, %v1582
      %v1585 = vmul.u32 %v1580, %v1581
      %v1586 = vmul.u32 %v1580, %v1582
      %v1587 = vshll.u32 %v1584, 16
      %v1588 = vshrl.u32 %v1584, 16
      %v1589 = vshll.u32 %v1585, 16
      %v1590 = vshrl.u32 %v1585, 16
      %vm1591 = vc.u32 %v1583, %v1587
      %v1592 = vsel %vm1591, 1, 0
      %v1593 = vadd.s32 %v1583, %v1587
      %v1594 = vadd.s32 %v1586, %v1592
      %vm1595 = vc.u32 %v1593, %v1589
      %v1596 = vsel %vm1595, 1, 0
      %v1597 = vadd.s32 %v1593, %v1589
      %v1598 = vadd.s32 %v1594, %v1596
      %v1599 = vadd.s32 %v1598, %v1588
      %v1600 = vadd.s32 %v1599, %v1590
      %v1601 = vand.u32 %v1578, 65535
      %v1602 = vshrl.u32 %v1578, 16
      %v1603 = vand.u32 %v1573, 65535
      %v1604 = vshrl.u32 %v1573, 16
      %v1605 = vmul.u32 %v1601, %v1603
      %v1606 = vmul.u32 %v1601, %v1604
      %v1607 = vmul.u32 %v1602, %v1603
      %v1608 = vmul.u32 %v1602, %v1604
      %v1609 = vshll.u32 %v1606, 16
      %v1610 = vshrl.u32 %v1606, 16
      %v1611 = vshll.u32 %v1607, 16
      %v1612 = vshrl.u32 %v1607, 16
      %vm1613 = vc.u32 %v1605, %v1609
      %v1614 = vsel %vm1613, 1, 0
      %v1615 = vadd.s32 %v1605, %v1609
      %v1616 = vadd.s32 %v1608, %v1614
      %vm1617 = vc.u32 %v1615, %v1611
      %v1618 = vsel %vm1617, 1, 0
      %v1619 = vadd.s32 %v1615, %v1611
      %v1620 = vadd.s32 %v1616, %v1618
      %v1621 = vadd.s32 %v1620, %v1610
      %v1622 = vadd.s32 %v1621, %v1612
      %v1623 = vmul.u32 %v1578, %v1569
      %v1624 = vadd.s32 %v1600, %v1619
      %vm1625 = vc.u32 %v1600, %v1619
      %v1626 = vadd.s32 %v1622, 1
      %v1627 = vsel %vm1625, %v1626, %v1622
      %v1628 = vadd.s32 %v1623, %v1627
      %v1629 = vadd.s32 %v1628, 536870912
      %v1630 = vshrl.u32 %v1629, 30
      %v1631 = vshll.u32 %v1630, 30
      %v1632 = vsub.s32 %v1628, %v1631
      %vm1633 = vcmp.lt.s32.totalorder %v1632, 0
      %v1634 = vsub.s32 0, %v1632
      %v1635 = vsel %vm1633, %v1634, %v1632
      %v1636 = vclz %v1635
      %v1637 = vsub.s32 %v1636, 2
      %vm1638 = vcmp.gt.s32.totalorder 0, %v1637
      %v1639 = vsel %vm1638, 0, %v1637
      %v1640 = vsub.s32 32, %v1639
      %v1641 = vshll.u32 %v1632, %v1639
      %v1642 = vshrl.u32 %v1624, %v1640
      %v1643 = vor.u32 %v1641, %v1642
      %v1644 = vsub.s32 4294967266, %v1639
      %v1645 = vadd.s32 %v1644, 127
      %v1646 = vshll.u32 %v1645, 23
      %v1647 = vor.u32 4788187, %v1646
      %v1648 = vand.u32 2147483647, %v1647
      %v1650 = vcvt.s32.f32 %v1643
      %v1651 = vmul.f32 %v1650, %v1648
      %v1652 = vxor.u32 %v1651, 2147483648
      %v1653 = vsel %vm1532, %v1652, %v1651
      %v1654 = vsub.s32 4, %v1630
      %v1655 = vsel %vm1532, %v1654, %v1630
      %v1656 = vsel %vm1531, %v752, %v1653
      %v1657 = vsel %vm1531, 0, %v1655
      %v1658 = vmul.f32 %v1656, %v1656
      %v1659 = vmul.f32 %v1658, -0.001358992
      %v1660 = vadd.f32 %v1659, 0.041655596
      %v1661 = vmul.f32 %v1658, %v1660
      %v1662 = vadd.f32 %v1661, -0.4999988
      %v1663 = vmul.f32 %v1658, %v1662
      %v1664 = vadd.f32 1.0, %v1663
      %v1665 = vmul.f32 %v1656, %v1656
      %v1666 = vmul.f32 %v1665, -0.00019511016
      %v1667 = vadd.f32 %v1666, 0.008332121
      %v1668 = vmul.f32 %v1665, %v1667
      %v1669 = vadd.f32 %v1668, -0.16666654
      %v1670 = vmul.f32 %v1665, %v1669
      %v1671 = vadd.f32 %v1670, 1.0
      %v1672 = vmul.f32 %v1671, %v1656
      %vm1673 = vweird.f32 %v752
      %v1674 = vadd.s32 %v1657, 3
      %v1675 = vand.u32 %v1674, 3
      %vm1676 = vcmp.lt.s32.totalorder %v1675, 2
      %vm1677 = vcmp.eq.s32.totalorder %v1675, 0
      %v1678 = vxor.u32 %v1672, 2147483648
      %v1679 = vsel %vm1677, %v1664, %v1678
      %vm1680 = vcmp.eq.s32.totalorder %v1675, 2
      %v1681 = vxor.u32 %v1664, 2147483648
      %v1682 = vsel %vm1680, %v1681, %v1672
      %v1683 = vsel %vm1676, %v1679, %v1682
      %v1684 = vsel %vm1673, nan, %v1683
      %v1685 = vand.u32 2147483647, %v753
      %vm1686 = vcmp.le.f32.partialorder %v1685, 0.7853982
      %vm1687 = vcmp.lt.s32.totalorder %v753, 0
      %v1688 = vand.u32 %v753, 2139095040
      %v1689 = vshrl.u32 %v1688, 23
      %v1690 = vsub.s32 %v1689, 127
      %v1691 = vand.u32 2147483647, %v753
      %v1692 = vand.u32 %v1691, 8388607
      %v1693 = vor.u32 %v1692, 8388608
      %v1694 = vsub.s32 0, %v1693
      %v1695 = vadd.s32 %v1690, 1
      %vm1696 = vcmp.gt.s32.totalorder %v1695, 0
      %v1697 = vsel %vm1696, %v1695, 0
      %v1698 = vshrl.u32 %v1697, 5
      %v1699 = vand.u32 %v1697, 31
      %v1700 = vsub.s32 32, %v1699
      %v1701 = vshrl.u32 683565275, %v1700
      %v1702 = vshll.u32 683565275, %v1699
      %v1703 = vshrl.u32 2475754826, %v1700
      %v1704 = vor.u32 %v1702, %v1703
      %v1705 = vshll.u32 2475754826, %v1699
      %v1706 = vshrl.u32 2131351028, %v1700
      %v1707 = vor.u32 %v1705, %v1706
      %v1708 = vshll.u32 2131351028, %v1699
      %v1709 = vshrl.u32 2102212464, %v1700
      %v1710 = vor.u32 %v1708, %v1709
      %v1711 = vshll.u32 2102212464, %v1699
      %v1712 = vshrl.u32 920167782, %v1700
      %v1713 = vor.u32 %v1711, %v1712
      %v1714 = vshll.u32 920167782, %v1699
      %v1715 = vshrl.u32 1326507024, %v1700
      %v1716 = vor.u32 %v1714, %v1715
      %vm1717 = vcmp.lt.s32.totalorder %v1698, 1
      %vm1718 = vcmp.lt.s32.totalorder %v1698, 2
      %vm1719 = vcmp.lt.s32.totalorder %v1698, 3
      %vm1720 = vcmp.lt.s32.totalorder %v1698, 4
      %v1721 = vsel %vm1717, %v1701, %v1704
      %v1722 = vsel %vm1720, %v1710, 2102212464
      %v1723 = vsel %vm1719, %v1707, %v1722
      %v1724 = vsel %vm1718, %v1721, %v1723
      %v1725 = vsel %vm1717, %v1704, %v1707
      %v1726 = vsel %vm1720, %v1713, 920167782
      %v1727 = vsel %vm1719, %v1710, %v1726
      %v1728 = vsel %vm1718, %v1725, %v1727
      %v1729 = vsel %vm1717, %v1707, %v1710
      %v1730 = vsel %vm1720, %v1716, 1326507024
      %v1731 = vsel %vm1719, %v1713, %v1730
      %v1732 = vsel %vm1718, %v1729, %v1731
      %v1733 = vshll.u32 %v1693, 8
      %v1734 = vand.u32 %v1733, 65535
      %v1735 = vshrl.u32 %v1733, 16
      %v1736 = vand.u32 %v1732, 65535
      %v1737 = vshrl.u32 %v1732, 16
      %v1738 = vmul.u32 %v1734, %v1736
      %v1739 = vmul.u32 %v1734, %v1737
      %v1740 = vmul.u32 %v1735, %v1736
      %v1741 = vmul.u32 %v1735, %v1737
      %v1742 = vshll.u32 %v1739, 16
      %v1743 = vshrl.u32 %v1739, 16
      %v1744 = vshll.u32 %v1740, 16
      %v1745 = vshrl.u32 %v1740, 16
      %vm1746 = vc.u32 %v1738, %v1742
      %v1747 = vsel %vm1746, 1, 0
      %v1748 = vadd.s32 %v1738, %v1742
      %v1749 = vadd.s32 %v1741, %v1747
      %vm1750 = vc.u32 %v1748, %v1744
      %v1751 = vsel %vm1750, 1, 0
      %v1752 = vadd.s32 %v1748, %v1744
      %v1753 = vadd.s32 %v1749, %v1751
      %v1754 = vadd.s32 %v1753, %v1743
      %v1755 = vadd.s32 %v1754, %v1745
      %v1756 = vand.u32 %v1733, 65535
      %v1757 = vshrl.u32 %v1733, 16
      %v1758 = vand.u32 %v1728, 65535
      %v1759 = vshrl.u32 %v1728, 16
      %v1760 = vmul.u32 %v1756, %v1758
      %v1761 = vmul.u32 %v1756, %v1759
      %v1762 = vmul.u32 %v1757, %v1758
      %v1763 = vmul.u32 %v1757, %v1759
      %v1764 = vshll.u32 %v1761, 16
      %v1765 = vshrl.u32 %v1761, 16
      %v1766 = vshll.u32 %v1762, 16
      %v1767 = vshrl.u32 %v1762, 16
      %vm1768 = vc.u32 %v1760, %v1764
      %v1769 = vsel %vm1768, 1, 0
      %v1770 = vadd.s32 %v1760, %v1764
      %v1771 = vadd.s32 %v1763, %v1769
      %vm1772 = vc.u32 %v1770, %v1766
      %v1773 = vsel %vm1772, 1, 0
      %v1774 = vadd.s32 %v1770, %v1766
      %v1775 = vadd.s32 %v1771, %v1773
      %v1776 = vadd.s32 %v1775, %v1765
      %v1777 = vadd.s32 %v1776, %v1767
      %v1778 = vmul.u32 %v1733, %v1724
      %v1779 = vadd.s32 %v1755, %v1774
      %vm1780 = vc.u32 %v1755, %v1774
      %v1781 = vadd.s32 %v1777, 1
      %v1782 = vsel %vm1780, %v1781, %v1777
      %v1783 = vadd.s32 %v1778, %v1782
      %v1784 = vadd.s32 %v1783, 536870912
      %v1785 = vshrl.u32 %v1784, 30
      %v1786 = vshll.u32 %v1785, 30
      %v1787 = vsub.s32 %v1783, %v1786
      %vm1788 = vcmp.lt.s32.totalorder %v1787, 0
      %v1789 = vsub.s32 0, %v1787
      %v1790 = vsel %vm1788, %v1789, %v1787
      %v1791 = vclz %v1790
      %v1792 = vsub.s32 %v1791, 2
      %vm1793 = vcmp.gt.s32.totalorder 0, %v1792
      %v1794 = vsel %vm1793, 0, %v1792
      %v1795 = vsub.s32 32, %v1794
      %v1796 = vshll.u32 %v1787, %v1794
      %v1797 = vshrl.u32 %v1779, %v1795
      %v1798 = vor.u32 %v1796, %v1797
      %v1799 = vsub.s32 4294967266, %v1794
      %v1800 = vadd.s32 %v1799, 127
      %v1801 = vshll.u32 %v1800, 23
      %v1802 = vor.u32 4788187, %v1801
      %v1803 = vand.u32 2147483647, %v1802
      %v1805 = vcvt.s32.f32 %v1798
      %v1806 = vmul.f32 %v1805, %v1803
      %v1807 = vxor.u32 %v1806, 2147483648
      %v1808 = vsel %vm1687, %v1807, %v1806
      %v1809 = vsub.s32 4, %v1785
      %v1810 = vsel %vm1687, %v1809, %v1785
      %v1811 = vsel %vm1686, %v753, %v1808
      %v1812 = vsel %vm1686, 0, %v1810
      %v1813 = vmul.f32 %v1811, %v1811
      %v1814 = vmul.f32 %v1813, -0.001358992
      %v1815 = vadd.f32 %v1814, 0.041655596
      %v1816 = vmul.f32 %v1813, %v1815
      %v1817 = vadd.f32 %v1816, -0.4999988
      %v1818 = vmul.f32 %v1813, %v1817
      %v1819 = vadd.f32 1.0, %v1818
      %v1820 = vmul.f32 %v1811, %v1811
      %v1821 = vmul.f32 %v1820, -0.00019511016
      %v1822 = vadd.f32 %v1821, 0.008332121
      %v1823 = vmul.f32 %v1820, %v1822
      %v1824 = vadd.f32 %v1823, -0.16666654
      %v1825 = vmul.f32 %v1820, %v1824
      %v1826 = vadd.f32 %v1825, 1.0
      %v1827 = vmul.f32 %v1826, %v1811
      %vm1828 = vweird.f32 %v753
      %v1829 = vadd.s32 %v1812, 3
      %v1830 = vand.u32 %v1829, 3
      %vm1831 = vcmp.lt.s32.totalorder %v1830, 2
      %vm1832 = vcmp.eq.s32.totalorder %v1830, 0
      %v1833 = vxor.u32 %v1827, 2147483648
      %v1834 = vsel %vm1832, %v1819, %v1833
      %vm1835 = vcmp.eq.s32.totalorder %v1830, 2
      %v1836 = vxor.u32 %v1819, 2147483648
      %v1837 = vsel %vm1835, %v1836, %v1827
      %v1838 = vsel %vm1831, %v1834, %v1837
      %v1839 = vsel %vm1828, nan, %v1838
      %v1840 = vand.u32 2147483647, %v754
      %vm1841 = vcmp.le.f32.partialorder %v1840, 0.7853982
      %vm1842 = vcmp.lt.s32.totalorder %v754, 0
      %v1843 = vand.u32 %v754, 2139095040
      %v1844 = vshrl.u32 %v1843, 23
      %v1845 = vsub.s32 %v1844, 127
      %v1846 = vand.u32 2147483647, %v754
      %v1847 = vand.u32 %v1846, 8388607
      %v1848 = vor.u32 %v1847, 8388608
      %v1849 = vsub.s32 0, %v1848
      %v1850 = vadd.s32 %v1845, 1
      %vm1851 = vcmp.gt.s32.totalorder %v1850, 0
      %v1852 = vsel %vm1851, %v1850, 0
      %v1853 = vshrl.u32 %v1852, 5
      %v1854 = vand.u32 %v1852, 31
      %v1855 = vsub.s32 32, %v1854
      %v1856 = vshrl.u32 683565275, %v1855
      %v1857 = vshll.u32 683565275, %v1854
      %v1858 = vshrl.u32 2475754826, %v1855
      %v1859 = vor.u32 %v1857, %v1858
      %v1860 = vshll.u32 2475754826, %v1854
      %v1861 = vshrl.u32 2131351028, %v1855
      %v1862 = vor.u32 %v1860, %v1861
      %v1863 = vshll.u32 2131351028, %v1854
      %v1864 = vshrl.u32 2102212464, %v1855
      %v1865 = vor.u32 %v1863, %v1864
      %v1866 = vshll.u32 2102212464, %v1854
      %v1867 = vshrl.u32 920167782, %v1855
      %v1868 = vor.u32 %v1866, %v1867
      %v1869 = vshll.u32 920167782, %v1854
      %v1870 = vshrl.u32 1326507024, %v1855
      %v1871 = vor.u32 %v1869, %v1870
      %vm1872 = vcmp.lt.s32.totalorder %v1853, 1
      %vm1873 = vcmp.lt.s32.totalorder %v1853, 2
      %vm1874 = vcmp.lt.s32.totalorder %v1853, 3
      %vm1875 = vcmp.lt.s32.totalorder %v1853, 4
      %v1876 = vsel %vm1872, %v1856, %v1859
      %v1877 = vsel %vm1875, %v1865, 2102212464
      %v1878 = vsel %vm1874, %v1862, %v1877
      %v1879 = vsel %vm1873, %v1876, %v1878
      %v1880 = vsel %vm1872, %v1859, %v1862
      %v1881 = vsel %vm1875, %v1868, 920167782
      %v1882 = vsel %vm1874, %v1865, %v1881
      %v1883 = vsel %vm1873, %v1880, %v1882
      %v1884 = vsel %vm1872, %v1862, %v1865
      %v1885 = vsel %vm1875, %v1871, 1326507024
      %v1886 = vsel %vm1874, %v1868, %v1885
      %v1887 = vsel %vm1873, %v1884, %v1886
      %v1888 = vshll.u32 %v1848, 8
      %v1889 = vand.u32 %v1888, 65535
      %v1890 = vshrl.u32 %v1888, 16
      %v1891 = vand.u32 %v1887, 65535
      %v1892 = vshrl.u32 %v1887, 16
      %v1893 = vmul.u32 %v1889, %v1891
      %v1894 = vmul.u32 %v1889, %v1892
      %v1895 = vmul.u32 %v1890, %v1891
      %v1896 = vmul.u32 %v1890, %v1892
      %v1897 = vshll.u32 %v1894, 16
      %v1898 = vshrl.u32 %v1894, 16
      %v1899 = vshll.u32 %v1895, 16
      %v1900 = vshrl.u32 %v1895, 16
      %vm1901 = vc.u32 %v1893, %v1897
      %v1902 = vsel %vm1901, 1, 0
      %v1903 = vadd.s32 %v1893, %v1897
      %v1904 = vadd.s32 %v1896, %v1902
      %vm1905 = vc.u32 %v1903, %v1899
      %v1906 = vsel %vm1905, 1, 0
      %v1907 = vadd.s32 %v1903, %v1899
      %v1908 = vadd.s32 %v1904, %v1906
      %v1909 = vadd.s32 %v1908, %v1898
      %v1910 = vadd.s32 %v1909, %v1900
      %v1911 = vand.u32 %v1888, 65535
      %v1912 = vshrl.u32 %v1888, 16
      %v1913 = vand.u32 %v1883, 65535
      %v1914 = vshrl.u32 %v1883, 16
      %v1915 = vmul.u32 %v1911, %v1913
      %v1916 = vmul.u32 %v1911, %v1914
      %v1917 = vmul.u32 %v1912, %v1913
      %v1918 = vmul.u32 %v1912, %v1914
      %v1919 = vshll.u32 %v1916, 16
      %v1920 = vshrl.u32 %v1916, 16
      %v1921 = vshll.u32 %v1917, 16
      %v1922 = vshrl.u32 %v1917, 16
      %vm1923 = vc.u32 %v1915, %v1919
      %v1924 = vsel %vm1923, 1, 0
      %v1925 = vadd.s32 %v1915, %v1919
      %v1926 = vadd.s32 %v1918, %v1924
      %vm1927 = vc.u32 %v1925, %v1921
      %v1928 = vsel %vm1927, 1, 0
      %v1929 = vadd.s32 %v1925, %v1921
      %v1930 = vadd.s32 %v1926, %v1928
      %v1931 = vadd.s32 %v1930, %v1920
      %v1932 = vadd.s32 %v1931, %v1922
      %v1933 = vmul.u32 %v1888, %v1879
      %v1934 = vadd.s32 %v1910, %v1929
      %vm1935 = vc.u32 %v1910, %v1929
      %v1936 = vadd.s32 %v1932, 1
      %v1937 = vsel %vm1935, %v1936, %v1932
      %v1938 = vadd.s32 %v1933, %v1937
      %v1939 = vadd.s32 %v1938, 536870912
      %v1940 = vshrl.u32 %v1939, 30
      %v1941 = vshll.u32 %v1940, 30
      %v1942 = vsub.s32 %v1938, %v1941
      %vm1943 = vcmp.lt.s32.totalorder %v1942, 0
      %v1944 = vsub.s32 0, %v1942
      %v1945 = vsel %vm1943, %v1944, %v1942
      %v1946 = vclz %v1945
      %v1947 = vsub.s32 %v1946, 2
      %vm1948 = vcmp.gt.s32.totalorder 0, %v1947
      %v1949 = vsel %vm1948, 0, %v1947
      %v1950 = vsub.s32 32, %v1949
      %v1951 = vshll.u32 %v1942, %v1949
      %v1952 = vshrl.u32 %v1934, %v1950
      %v1953 = vor.u32 %v1951, %v1952
      %v1954 = vsub.s32 4294967266, %v1949
      %v1955 = vadd.s32 %v1954, 127
      %v1956 = vshll.u32 %v1955, 23
      %v1957 = vor.u32 4788187, %v1956
      %v1958 = vand.u32 2147483647, %v1957
      %v1960 = vcvt.s32.f32 %v1953
      %v1961 = vmul.f32 %v1960, %v1958
      %v1962 = vxor.u32 %v1961, 2147483648
      %v1963 = vsel %vm1842, %v1962, %v1961
      %v1964 = vsub.s32 4, %v1940
      %v1965 = vsel %vm1842, %v1964, %v1940
      %v1966 = vsel %vm1841, %v754, %v1963
      %v1967 = vsel %vm1841, 0, %v1965
      %v1968 = vmul.f32 %v1966, %v1966
      %v1969 = vmul.f32 %v1968, -0.001358992
      %v1970 = vadd.f32 %v1969, 0.041655596
      %v1971 = vmul.f32 %v1968, %v1970
      %v1972 = vadd.f32 %v1971, -0.4999988
      %v1973 = vmul.f32 %v1968, %v1972
      %v1974 = vadd.f32 1.0, %v1973
      %v1975 = vmul.f32 %v1966, %v1966
      %v1976 = vmul.f32 %v1975, -0.00019511016
      %v1977 = vadd.f32 %v1976, 0.008332121
      %v1978 = vmul.f32 %v1975, %v1977
      %v1979 = vadd.f32 %v1978, -0.16666654
      %v1980 = vmul.f32 %v1975, %v1979
      %v1981 = vadd.f32 %v1980, 1.0
      %v1982 = vmul.f32 %v1981, %v1966
      %vm1983 = vweird.f32 %v754
      %v1984 = vadd.s32 %v1967, 3
      %v1985 = vand.u32 %v1984, 3
      %vm1986 = vcmp.lt.s32.totalorder %v1985, 2
      %vm1987 = vcmp.eq.s32.totalorder %v1985, 0
      %v1988 = vxor.u32 %v1982, 2147483648
      %v1989 = vsel %vm1987, %v1974, %v1988
      %vm1990 = vcmp.eq.s32.totalorder %v1985, 2
      %v1991 = vxor.u32 %v1974, 2147483648
      %v1992 = vsel %vm1990, %v1991, %v1982
      %v1993 = vsel %vm1986, %v1989, %v1992
      %v1994 = vsel %vm1983, nan, %v1993
      %v1995 = vmul.f32 %v747, %v1529
      %v1996 = vmul.f32 %v748, %v1684
      %v1997 = vmul.f32 %v749, %v1839
      %v1998 = vmul.f32 %v750, %v1994
      %1999 = vst [vmem:[%s325] sm:$0xff] %v1371
      %2000 = vst.msk [vmem:[%s325 + $0x8] sm:$0xff] %vm449, %v1372
      %2001 = vst [vmem:[%s325 + $0x10] sm:$0xff] %v1373
      %2002 = vst.msk [vmem:[%s325 + $0x18] sm:$0xff] %vm449, %v1374
      %2003 = vst [vmem:[%s325 + $0x20] sm:$0xff] %v1995
      %2004 = vst.msk [vmem:[%s325 + $0x28] sm:$0xff] %vm449, %v1996
      %2005 = vst [vmem:[%s325 + $0x30] sm:$0xff] %v1997
      %2006 = vst.msk [vmem:[%s325 + $0x38] sm:$0xff] %vm449, %v1998
      %p2007 = scmp.lt.s32.totalorder %s19, 1
      %s2008 = scalar_select %p2007, %s19, 1
      %s2009 = smul.addr %s2008, 8
      %s2010 = smul.addr %s2009, 8
      %s2011 = scalar_lea.vmem %s8, %s2010
      // Predicated region
      $region53: #{ddnf_pallas.1} parent=51 // pred_check
        %p2012 = pneg %p215
      $region54: #{ddnf_pallas.1} parent=51 // pred_check_branch
        %2014 = sbr.rel (%p2012) target = $region56
      $region55: #{ddnf_pallas.1} parent=51 // pred_region
        _
      $region56: #{ddnf_pallas.1} parent=51 // pred_fallthru
        _
    $region52: #{ddnf_pallas.1} parent=5 // pred_fallthru
      _
    %p2015 = scmp.le.s32.totalorder 2, %s14
    // Predicated region
    $region57: #{ddnf_pallas.1} parent=5 // pred_check
      %p2016 = pneg %p2015
    $region58: #{ddnf_pallas.1} parent=5 // pred_check_branch
      %2018 = sbr.rel (%p2016) target = $region60
    $region59: #{ddnf_pallas.1} parent=5 // pred_region
      %s2019 = ssub.s32 %s14, 2
      // Predicated region
      $region61: #{ddnf_pallas.1} parent=59 // pred_check
        %p2020 = pneg %p221
      $region62: #{ddnf_pallas.1} parent=59 // pred_check_branch
        %2022 = sbr.rel (%p2020) target = $region64
      $region63: #{ddnf_pallas.1} parent=59 // pred_region
        %p2023 = scmp.lt.s32.totalorder %s20, 1
        %s2024 = scalar_select %p2023, %s20, 1
        %s2025 = smul.addr %s2024, 8
        %s2026 = smul.addr %s2025, 8
        %s2027 = scalar_lea.vmem %s8, %s2026
      $region64: #{ddnf_pallas.1} parent=59 // pred_fallthru
        _
    $region60: #{ddnf_pallas.1} parent=5 // pred_fallthru
      _
  $region6: #{ddnf_pallas.1} parent=0 // loop_footer
    %s18 = sadd.s32 1, %s14
  $region7: #{ddnf_pallas.1} parent=0 // loop_footer_branch
    %13 = sbr.rel target = $region3
  $region8: #{ddnf_pallas.1} parent=0 // loop_exit
    _

// kernel: reverse.1
$region0: #{reverse.1}
  #allocation0 [shape = 's32[1]{0}', space=sflag, size = 0x4, scoped, tag = 'scoped memory for reverse.1']
  %s0 = inlined_call_operand.vmem [shape: f32[2,16,16,7], index: 0, kind: input, shape index: {}]
  %s1 = inlined_call_operand.vmem [shape: f32[2,16,16,7], index: 1, kind: output, shape index: {}]
  %s2 = scalar_lea.vmem %s0, 96
  %v3 = vld [vmem:[%s2] sm:$0xff]
  %4 = vst [vmem:[%s1] sm:$0xff] %v3
  %s5 = scalar_lea.vmem %s0, 208
  %v6 = vld [vmem:[%s5] sm:$0xff]
  %s7 = scalar_lea.vmem %s1, 112
  %8 = vst [vmem:[%s7] sm:$0xff] %v6
  %s9 = scalar_lea.vmem %s0, 80
  %v10 = vld [vmem:[%s9] sm:$0xff]
  %s11 = scalar_lea.vmem %s1, 16
  %12 = vst [vmem:[%s11] sm:$0xff] %v10
  %s13 = scalar_lea.vmem %s0, 192
  %v14 = vld [vmem:[%s13] sm:$0xff]
  %s15 = scalar_lea.vmem %s1, 128
  %16 = vst [vmem:[%s15] sm:$0xff] %v14
  %s17 = scalar_lea.vmem %s0, 64
  %v18 = vld [vmem:[%s17] sm:$0xff]
  %s19 = scalar_lea.vmem %s1, 32
  %20 = vst [vmem:[%s19] sm:$0xff] %v18
  %s21 = scalar_lea.vmem %s0, 176
  %v22 = vld [vmem:[%s21] sm:$0xff]
  %s23 = scalar_lea.vmem %s1, 144
  %24 = vst [vmem:[%s23] sm:$0xff] %v22
  %s25 = scalar_lea.vmem %s0, 48
  %v26 = vld [vmem:[%s25] sm:$0xff]
  %s27 = scalar_lea.vmem %s1, 48
  %28 = vst [vmem:[%s27] sm:$0xff] %v26
  %s29 = scalar_lea.vmem %s0, 160
  %v30 = vld [vmem:[%s29] sm:$0xff]
  %s31 = scalar_lea.vmem %s1, 160
  %32 = vst [vmem:[%s31] sm:$0xff] %v30
  %s33 = scalar_lea.vmem %s0, 32
  %v34 = vld [vmem:[%s33] sm:$0xff]
  %s35 = scalar_lea.vmem %s1, 64
  %36 = vst [vmem:[%s35] sm:$0xff] %v34
  %s37 = scalar_lea.vmem %s0, 144
  %v38 = vld [vmem:[%s37] sm:$0xff]
  %s39 = scalar_lea.vmem %s1, 176
  %40 = vst [vmem:[%s39] sm:$0xff] %v38
  %s41 = scalar_lea.vmem %s0, 16
  %v42 = vld [vmem:[%s41] sm:$0xff]
  %s43 = scalar_lea.vmem %s1, 80
  %44 = vst [vmem:[%s43] sm:$0xff] %v42
  %s45 = scalar_lea.vmem %s0, 128
  %v46 = vld [vmem:[%s45] sm:$0xff]
  %s47 = scalar_lea.vmem %s1, 192
  %48 = vst [vmem:[%s47] sm:$0xff] %v46
  %v49 = vld [vmem:[%s0] sm:$0xff]
  %s50 = scalar_lea.vmem %s1, 96
  %51 = vst [vmem:[%s50] sm:$0xff] %v49
  %s52 = scalar_lea.vmem %s0, 112
  %v53 = vld [vmem:[%s52] sm:$0xff]
  %s54 = scalar_lea.vmem %s1, 208
  %55 = vst [vmem:[%s54] sm:$0xff] %v53
  %s56 = scalar_lea.vmem %s0, 104
  %v57 = vld [vmem:[%s56] sm:$0xff]
  %s58 = scalar_lea.vmem %s1, 8
  %59 = vst [vmem:[%s58] sm:$0xff] %v57
  %s60 = scalar_lea.vmem %s0, 216
  %v61 = vld [vmem:[%s60] sm:$0xff]
  %s62 = scalar_lea.vmem %s1, 120
  %63 = vst [vmem:[%s62] sm:$0xff] %v61
  %s64 = scalar_lea.vmem %s0, 88
  %v65 = vld [vmem:[%s64] sm:$0xff]
  %s66 = scalar_lea.vmem %s1, 24
  %67 = vst [vmem:[%s66] sm:$0xff] %v65
  %s68 = scalar_lea.vmem %s0, 200
  %v69 = vld [vmem:[%s68] sm:$0xff]
  %s70 = scalar_lea.vmem %s1, 136
  %71 = vst [vmem:[%s70] sm:$0xff] %v69
  %s72 = scalar_lea.vmem %s0, 72
  %v73 = vld [vmem:[%s72] sm:$0xff]
  %s74 = scalar_lea.vmem %s1, 40
  %75 = vst [vmem:[%s74] sm:$0xff] %v73
  %s76 = scalar_lea.vmem %s0, 184
  %v77 = vld [vmem:[%s76] sm:$0xff]
  %s78 = scalar_lea.vmem %s1, 152
  %79 = vst [vmem:[%s78] sm:$0xff] %v77
  %s80 = scalar_lea.vmem %s0, 56
  %v81 = vld [vmem:[%s80] sm:$0xff]
  %s82 = scalar_lea.vmem %s1, 56
  %83 = vst [vmem:[%s82] sm:$0xff] %v81
  %s84 = scalar_lea.vmem %s0, 168
  %v85 = vld [vmem:[%s84] sm:$0xff]
  %s86 = scalar_lea.vmem %s1, 168
  %87 = vst [vmem:[%s86] sm:$0xff] %v85
  %s88 = scalar_lea.vmem %s0, 40
  %v89 = vld [vmem:[%s88] sm:$0xff]
  %s90 = scalar_lea.vmem %s1, 72
  %91 = vst [vmem:[%s90] sm:$0xff] %v89
  %s92 = scalar_lea.vmem %s0, 152
  %v93 = vld [vmem:[%s92] sm:$0xff]
  %s94 = scalar_lea.vmem %s1, 184
  %95 = vst [vmem:[%s94] sm:$0xff] %v93
  %s96 = scalar_lea.vmem %s0, 24
  %v97 = vld [vmem:[%s96] sm:$0xff]
  %s98 = scalar_lea.vmem %s1, 88
  %99 = vst [vmem:[%s98] sm:$0xff] %v97
  %s100 = scalar_lea.vmem %s0, 136
  %v101 = vld [vmem:[%s100] sm:$0xff]
  %s102 = scalar_lea.vmem %s1, 200
  %103 = vst [vmem:[%s102] sm:$0xff] %v101
  %s104 = scalar_lea.vmem %s0, 8
  %v105 = vld [vmem:[%s104] sm:$0xff]
  %s106 = scalar_lea.vmem %s1, 104
  %107 = vst [vmem:[%s106] sm:$0xff] %v105
  %s108 = scalar_lea.vmem %s0, 120
  %v109 = vld [vmem:[%s108] sm:$0xff]
  %s110 = scalar_lea.vmem %s1, 216
  %111 = vst [vmem:[%s110] sm:$0xff] %v109

</llo_original>
